<compile_context>
chip_gen: v5e
topology: v5e:2x2
jax: 0.10.0
libtpu: 0.0.40
codegen_flags: <defaults>
</compile_context>

<pallas_src>
import jax
import jax.numpy as jnp
from jax.experimental import pallas as pl
from jax.experimental.pallas import tpu as pltpu

MXU_DTYPE = jnp.bfloat16  # matmul-input dtype; accumulation stays f32


# ----------------------------------------------------------------------------
# Pallas kernels
# ----------------------------------------------------------------------------
def conv_pool_kernel(p_ref, w_ref, b_ref, o_ref):
    # p_ref: (4, TM, K) bf16 im2col patches; leading axis = 2x2 pool-window pos
    # w_ref: (K, Cout) bf16   b_ref: (1, Cout) f32   o_ref: (TM, Cout) f32
    w = w_ref[...]

    def tap(i):
        return jnp.dot(p_ref[i], w, preferred_element_type=jnp.float32)

    pooled = jnp.maximum(jnp.maximum(tap(0), tap(1)),
                         jnp.maximum(tap(2), tap(3)))
    # per-channel bias commutes with max; relu(maxpool) == maxpool(relu)
    o_ref[...] = jnp.maximum(pooled + b_ref[...], 0.0)


def fc_tail_kernel(x_ref, w1_ref, b1_ref, w2_ref, b2_ref, o_ref):
    # fc1 + relu, fc2 + relu, log_softmax fused into a single kernel.
    w1 = w1_ref[...]
    h = jnp.dot(x_ref[...].astype(w1.dtype), w1,
                preferred_element_type=jnp.float32)
    h = jnp.maximum(h + b1_ref[...], 0.0)

    w2 = w2_ref[...]
    z = jnp.dot(h.astype(w2.dtype), w2, preferred_element_type=jnp.float32)
    z = jnp.maximum(z + b2_ref[...], 0.0)

    m = jnp.max(z, axis=-1, keepdims=True)
    s = z - m
    lse = jnp.log(jnp.sum(jnp.exp(s), axis=-1, keepdims=True))
    o_ref[...] = (s - lse).astype(o_ref.dtype)


# ----------------------------------------------------------------------------
# Pallas wrappers
# ----------------------------------------------------------------------------
def _pick_row_tile(m, max_tile=512):
    """Largest multiple-of-8 divisor of m that is <= max_tile (else m)."""
    if m <= max_tile:
        return m
    for t in range(max_tile, 0, -8):
        if m % t == 0:
            return t
    return m


def conv_bias_pool_relu(patches, w, b):
    # patches: (4, M_pool, K) bf16, w: (K, Cout) bf16, b: (1, Cout) f32
    _, m_pool, k = patches.shape
    cout = w.shape[1]
    tm = _pick_row_tile(m_pool)
    return pl.pallas_call(
        conv_pool_kernel,
        out_shape=jax.ShapeDtypeStruct((m_pool, cout), jnp.float32),
        grid=(m_pool // tm,),
        in_specs=[
            pl.BlockSpec((4, tm, k), lambda i: (0, i, 0)),
            pl.BlockSpec((k, cout), lambda i: (0, 0)),
            pl.BlockSpec((1, cout), lambda i: (0, 0)),
        ],
        out_specs=pl.BlockSpec((tm, cout), lambda i: (i, 0)),
        compiler_params=pltpu.CompilerParams(
            dimension_semantics=("parallel",)),
    )(patches, w, b)


def fc_log_softmax(x, w1, b1, w2, b2):
    n = x.shape[0]
    n_out = w2.shape[1]
    return pl.pallas_call(
        fc_tail_kernel,
        out_shape=jax.ShapeDtypeStruct((n, n_out), jnp.float32),
        in_specs=[
            pl.BlockSpec(x.shape, lambda: (0, 0)),
            pl.BlockSpec(w1.shape, lambda: (0, 0)),
            pl.BlockSpec(b1.shape, lambda: (0, 0)),
            pl.BlockSpec(w2.shape, lambda: (0, 0)),
            pl.BlockSpec(b2.shape, lambda: (0, 0)),
        ],
        out_specs=pl.BlockSpec((n, n_out), lambda: (0, 0)),
    )(x, w1, b1, w2, b2)


# ----------------------------------------------------------------------------
# Glue: channels-last im2col that also groups the 2x2 pool window up front.
# (Single XLA gather/transpose pass; emits bf16 so the conv kernel's dominant
#  HBM->VMEM DMA is half-width.)
# ----------------------------------------------------------------------------
def im2col_pool(x, kh, kw, dil):
    # x: (N, H, W, C) channels-last
    n, h, w, c = x.shape
    oh = h - (kh - 1) * dil
    ow = w - (kw - 1) * dil
    ph, pw = oh // 2, ow // 2
    taps = []
    for i in range(kh):
        for j in range(kw):
            taps.append(x[:, i * dil:i * dil + oh, j * dil:j * dil + ow, :])
    p = jnp.stack(taps, axis=3)                       # (N, OH, OW, T, C)
    p = p.reshape(n, ph, 2, pw, 2, kh * kw, c)
    p = p.transpose(2, 4, 0, 1, 3, 5, 6)              # (2, 2, N, PH, PW, T, C)
    p = p.reshape(4, n * ph * pw, kh * kw * c)        # rows = (n, ph, pw)
    return p.astype(MXU_DTYPE), ph, pw


# ----------------------------------------------------------------------------
# Parameters (PyTorch layout) and one-time prep into kernel-friendly layout
# ----------------------------------------------------------------------------
def init_params(key):
    ks = jax.random.split(key, 8)

    def w(k, shape, fan_in):
        return (jax.random.normal(k, shape, jnp.float32) /
                jnp.sqrt(fan_in)).astype(jnp.float32)

    return {
        "conv1_w": w(ks[0], (32, 1, 7, 7), 1 * 7 * 7),
        "conv1_b": w(ks[1], (32,), 1 * 7 * 7),
        "conv2_w": w(ks[2], (128, 32, 5, 5), 32 * 5 * 5),
        "conv2_b": w(ks[3], (128,), 32 * 5 * 5),
        "fc1_w": w(ks[4], (100, 512), 512),
        "fc1_b": w(ks[5], (100,), 512),
        "fc2_w": w(ks[6], (10, 100), 100),
        "fc2_b": w(ks[7], (10,), 100),
    }


def prepare_params(params):
    """One-time host-side conversion to channels-last / bf16 kernel layout."""
    # conv weights: (O, Cin, kh, kw) -> (kh*kw*Cin, O), matching im2col K order
    conv1_w = jnp.transpose(params["conv1_w"], (2, 3, 1, 0)).reshape(49, 32)
    conv2_w = jnp.transpose(params["conv2_w"], (2, 3, 1, 0)).reshape(800, 128)
    # Fold PyTorch's NCHW view(-1, 512) flatten order (c*4 + h*2 + w) into
    # fc1's weight so the activation can stay in (h, w, c) flatten order.
    w1 = params["fc1_w"].reshape(100, 128, 2, 2)        # (O, c, h, w)
    w1 = jnp.transpose(w1, (0, 2, 3, 1)).reshape(100, 512)  # cols = h*256+w*128+c
    return {
        "conv1_w": conv1_w.astype(MXU_DTYPE),
        "conv1_b": params["conv1_b"].reshape(1, 32),
        "conv2_w": conv2_w.astype(MXU_DTYPE),
        "conv2_b": params["conv2_b"].reshape(1, 128),
        "fc1_w": jnp.transpose(w1).astype(MXU_DTYPE),    # (512, 100)
        "fc1_b": params["fc1_b"].reshape(1, 100),
        "fc2_w": jnp.transpose(params["fc2_w"]).astype(MXU_DTYPE),  # (100, 10)
        "fc2_b": params["fc2_b"].reshape(1, 10),
    }


# ----------------------------------------------------------------------------
# Model forward (3 pallas_calls total)
# ----------------------------------------------------------------------------
def cnn_dilation_net_forward(x, prep):
    n = x.shape[0]
    x = jnp.transpose(x, (0, 2, 3, 1))                      # NCHW -> NHWC (C=1)

    # conv1(1->32, k=7, dil=2) + maxpool2 + relu, fused
    p1, ph1, pw1 = im2col_pool(x, 7, 7, 2)                  # (4, N*64, 49) bf16
    y1 = conv_bias_pool_relu(p1, prep["conv1_w"], prep["conv1_b"])  # (N*64, 32)
    y1 = y1.reshape(n, ph1, pw1, 32)                        # (N, 8, 8, 32) NHWC

    # conv2(32->128, k=5) + maxpool2 + relu, fused
    # TODO(synk): Dropout2d is identity in eval mode; training-mode channel
    # dropout (PyTorch RNG) is not reproduced.
    p2, ph2, pw2 = im2col_pool(y1, 5, 5, 1)                 # (4, N*4, 800) bf16
    y2 = conv_bias_pool_relu(p2, prep["conv2_w"], prep["conv2_b"])  # (N*4, 128)

    # flatten in (h, w, c) order; the NCHW permutation is baked into fc1_w
    flat = y2.reshape(n, 512)
    return fc_log_softmax(flat, prep["fc1_w"], prep["fc1_b"],
                          prep["fc2_w"], prep["fc2_b"])     # (N, 10)


# ----------------------------------------------------------------------------
# Pure-JAX reference (f32, PyTorch layout) for a correctness check
# ----------------------------------------------------------------------------
def reference_forward(x, params):
    y = jax.lax.conv_general_dilated(
        x, params["conv1_w"], window_strides=(1, 1), padding="VALID",
        rhs_dilation=(2, 2), dimension_numbers=("NCHW", "OIHW", "NCHW"))
    y = y + params["conv1_b"][None, :, None, None]
    y = jax.lax.reduce_window(y, -jnp.inf, jax.lax.max,
                              (1, 1, 2, 2), (1, 1, 2, 2), "VALID")
    y = jax.nn.relu(y)
    y = jax.lax.conv_general_dilated(
        y, params["conv2_w"], window_strides=(1, 1), padding="VALID",
        dimension_numbers=("NCHW", "OIHW", "NCHW"))
    y = y + params["conv2_b"][None, :, None, None]
    y = jax.lax.reduce_window(y, -jnp.inf, jax.lax.max,
                              (1, 1, 2, 2), (1, 1, 2, 2), "VALID")
    y = jax.nn.relu(y)
    flat = y.reshape(x.shape[0], 512)
    h = jax.nn.relu(flat @ params["fc1_w"].T + params["fc1_b"])
    z = jax.nn.relu(h @ params["fc2_w"].T + params["fc2_b"])
    return jax.nn.log_softmax(z, axis=1)


if __name__ == "__main__":
    key = jax.random.PRNGKey(0)
    k_params, k_x = jax.random.split(key)
    params = init_params(k_params)
    prep = prepare_params(params)

    # MNIST-shaped input (required by the hard-coded view(-1, 512)): (N, 1, 28, 28)
    x = jax.random.normal(k_x, (2, 1, 28, 28), jnp.float32)

    out = jax.jit(cnn_dilation_net_forward)(x, prep)
    out = jax.block_until_ready(out)

    assert out.shape == (2, 10)
    # rows of log_softmax must (log-)sum to ~1
    assert jnp.allclose(jnp.exp(out).sum(axis=1), 1.0, atol=1e-4)

    # semantic check vs a pure-JAX f32 reference (loose tol: bf16 MXU inputs)
    ref = reference_forward(x, params)
    assert jnp.allclose(out, ref, atol=1e-1), float(jnp.max(jnp.abs(out - ref)))

    print("KERNEL_OK")
</pallas_src>

<mosaic_0001>
module attributes {stable_mosaic.version = 11 : i64} {
  func.func @conv_pool_kernel(%arg0: i32, %arg1: memref<4x128x49xbf16, #tpu.memory_space<vmem>>, %arg2: memref<49x32xbf16, #tpu.memory_space<vmem>>, %arg3: memref<1x32xf32, #tpu.memory_space<vmem>>, %arg4: memref<128x32xf32, #tpu.memory_space<vmem>>) attributes {dimension_semantics = [#tpu.dimension_semantics<parallel>], iteration_bounds = array<i64: 1>, scalar_prefetch = 0 : i64, scratch_operands = 0 : i64, tpu.core_type = #tpu.core_type<tc>, window_params = [{transform_indices = @transform_0, window_bounds = array<i64: 4, 128, 49>}, {pipeline_mode = #tpu.pipeline_mode<synchronous>, transform_indices = @transform_1, window_bounds = array<i64: 49, 32>}, {pipeline_mode = #tpu.pipeline_mode<synchronous>, transform_indices = @transform_2, window_bounds = array<i64: 1, 32>}, {transform_indices = @transform_3, window_bounds = array<i64: 128, 32>}]} {
    %c0 = arith.constant 0 : index
    %c0_0 = arith.constant 0 : index
    %0 = vector.load %arg2[%c0, %c0_0] : memref<49x32xbf16, #tpu.memory_space<vmem>>, vector<49x32xbf16>
    %c0_1 = arith.constant 0 : index
    %c0_2 = arith.constant 0 : index
    %c0_3 = arith.constant 0 : index
    %1 = vector.load %arg1[%c0_1, %c0_2, %c0_3] : memref<4x128x49xbf16, #tpu.memory_space<vmem>>, vector<1x128x49xbf16>
    %2 = vector.shape_cast %1 : vector<1x128x49xbf16> to vector<128x49xbf16>
    %cst = arith.constant dense<0.000000e+00> : vector<128x32xf32>
    %3 = tpu.matmul %2, %0, %cst {dimension_numbers = #tpu.dot_dimension_numbers<[1], [0], [0], [1], [0, 0, 1, 1], [], []>} : vector<128x49xbf16>, vector<49x32xbf16>, vector<128x32xf32> -> vector<128x32xf32>
    %c1 = arith.constant 1 : index
    %c0_4 = arith.constant 0 : index
    %c0_5 = arith.constant 0 : index
    %4 = vector.load %arg1[%c1, %c0_4, %c0_5] : memref<4x128x49xbf16, #tpu.memory_space<vmem>>, vector<1x128x49xbf16>
    %5 = vector.shape_cast %4 : vector<1x128x49xbf16> to vector<128x49xbf16>
    %cst_6 = arith.constant dense<0.000000e+00> : vector<128x32xf32>
    %6 = tpu.matmul %5, %0, %cst_6 {dimension_numbers = #tpu.dot_dimension_numbers<[1], [0], [0], [1], [0, 0, 1, 1], [], []>} : vector<128x49xbf16>, vector<49x32xbf16>, vector<128x32xf32> -> vector<128x32xf32>
    %7 = arith.maximumf %3, %6 : vector<128x32xf32>
    %c2 = arith.constant 2 : index
    %c0_7 = arith.constant 0 : index
    %c0_8 = arith.constant 0 : index
    %8 = vector.load %arg1[%c2, %c0_7, %c0_8] : memref<4x128x49xbf16, #tpu.memory_space<vmem>>, vector<1x128x49xbf16>
    %9 = vector.shape_cast %8 : vector<1x128x49xbf16> to vector<128x49xbf16>
    %cst_9 = arith.constant dense<0.000000e+00> : vector<128x32xf32>
    %10 = tpu.matmul %9, %0, %cst_9 {dimension_numbers = #tpu.dot_dimension_numbers<[1], [0], [0], [1], [0, 0, 1, 1], [], []>} : vector<128x49xbf16>, vector<49x32xbf16>, vector<128x32xf32> -> vector<128x32xf32>
    %c3 = arith.constant 3 : index
    %c0_10 = arith.constant 0 : index
    %c0_11 = arith.constant 0 : index
    %11 = vector.load %arg1[%c3, %c0_10, %c0_11] : memref<4x128x49xbf16, #tpu.memory_space<vmem>>, vector<1x128x49xbf16>
    %12 = vector.shape_cast %11 : vector<1x128x49xbf16> to vector<128x49xbf16>
    %cst_12 = arith.constant dense<0.000000e+00> : vector<128x32xf32>
    %13 = tpu.matmul %12, %0, %cst_12 {dimension_numbers = #tpu.dot_dimension_numbers<[1], [0], [0], [1], [0, 0, 1, 1], [], []>} : vector<128x49xbf16>, vector<49x32xbf16>, vector<128x32xf32> -> vector<128x32xf32>
    %14 = arith.maximumf %10, %13 : vector<128x32xf32>
    %15 = arith.maximumf %7, %14 : vector<128x32xf32>
    %c0_13 = arith.constant 0 : index
    %c0_14 = arith.constant 0 : index
    %16 = vector.load %arg3[%c0_13, %c0_14] : memref<1x32xf32, #tpu.memory_space<vmem>>, vector<1x32xf32>
    %17 = vector.broadcast %16 : vector<1x32xf32> to vector<128x32xf32>
    %18 = arith.addf %15, %17 : vector<128x32xf32>
    %cst_15 = arith.constant 0.000000e+00 : f32
    %19 = vector.broadcast %cst_15 : f32 to vector<128x32xf32>
    %20 = arith.maximumf %18, %19 : vector<128x32xf32>
    %c0_16 = arith.constant 0 : index
    %c0_17 = arith.constant 0 : index
    %21 = vector.load %arg4[%c0_16, %c0_17] : memref<128x32xf32, #tpu.memory_space<vmem>>, vector<128x32xf32>
    tpu.vector_store %arg4[%c0_16, %c0_17], %20 {strides = array<i32>} : memref<128x32xf32, #tpu.memory_space<vmem>>, vector<128x32xf32>,
    return
  }
  func.func @transform_0(%arg0: i32) -> (i32, i32, i32) {
    %c0_i32 = arith.constant 0 : i32
    %c0_i32_0 = arith.constant 0 : i32
    %c0_i32_1 = arith.constant 0 : i32
    return %c0_i32, %arg0, %c0_i32_0 : i32, i32, i32
  }
  func.func @transform_1(%arg0: i32) -> (i32, i32) {
    %c0_i32 = arith.constant 0 : i32
    %c0_i32_0 = arith.constant 0 : i32
    %c0_i32_1 = arith.constant 0 : i32
    return %c0_i32, %c0_i32_0 : i32, i32
  }
  func.func @transform_2(%arg0: i32) -> (i32, i32) {
    %c0_i32 = arith.constant 0 : i32
    %c0_i32_0 = arith.constant 0 : i32
    %c0_i32_1 = arith.constant 0 : i32
    return %c0_i32, %c0_i32_0 : i32, i32
  }
  func.func @transform_3(%arg0: i32) -> (i32, i32) {
    %c0_i32 = arith.constant 0 : i32
    %c0_i32_0 = arith.constant 0 : i32
    return %arg0, %c0_i32 : i32, i32
  }
}

module attributes {stable_mosaic.version = 11 : i64} {
  func.func @conv_pool_kernel(%arg0: i32, %arg1: memref<4x8x800xbf16, #tpu.memory_space<vmem>>, %arg2: memref<800x128xbf16, #tpu.memory_space<vmem>>, %arg3: memref<1x128xf32, #tpu.memory_space<vmem>>, %arg4: memref<8x128xf32, #tpu.memory_space<vmem>>) attributes {dimension_semantics = [#tpu.dimension_semantics<parallel>], iteration_bounds = array<i64: 1>, scalar_prefetch = 0 : i64, scratch_operands = 0 : i64, tpu.core_type = #tpu.core_type<tc>, window_params = [{transform_indices = @transform_0, window_bounds = array<i64: 4, 8, 800>}, {pipeline_mode = #tpu.pipeline_mode<synchronous>, transform_indices = @transform_1, window_bounds = array<i64: 800, 128>}, {pipeline_mode = #tpu.pipeline_mode<synchronous>, transform_indices = @transform_2, window_bounds = array<i64: 1, 128>}, {transform_indices = @transform_3, window_bounds = array<i64: 8, 128>}]} {
    %c0 = arith.constant 0 : index
    %c0_0 = arith.constant 0 : index
    %0 = vector.load %arg2[%c0, %c0_0] : memref<800x128xbf16, #tpu.memory_space<vmem>>, vector<800x128xbf16>
    %c0_1 = arith.constant 0 : index
    %c0_2 = arith.constant 0 : index
    %c0_3 = arith.constant 0 : index
    %1 = vector.load %arg1[%c0_1, %c0_2, %c0_3] : memref<4x8x800xbf16, #tpu.memory_space<vmem>>, vector<1x8x800xbf16>
    %2 = vector.shape_cast %1 : vector<1x8x800xbf16> to vector<8x800xbf16>
    %cst = arith.constant dense<0.000000e+00> : vector<8x128xf32>
    %3 = tpu.matmul %2, %0, %cst {dimension_numbers = #tpu.dot_dimension_numbers<[1], [0], [0], [1], [0, 0, 1, 1], [], []>} : vector<8x800xbf16>, vector<800x128xbf16>, vector<8x128xf32> -> vector<8x128xf32>
    %c1 = arith.constant 1 : index
    %c0_4 = arith.constant 0 : index
    %c0_5 = arith.constant 0 : index
    %4 = vector.load %arg1[%c1, %c0_4, %c0_5] : memref<4x8x800xbf16, #tpu.memory_space<vmem>>, vector<1x8x800xbf16>
    %5 = vector.shape_cast %4 : vector<1x8x800xbf16> to vector<8x800xbf16>
    %cst_6 = arith.constant dense<0.000000e+00> : vector<8x128xf32>
    %6 = tpu.matmul %5, %0, %cst_6 {dimension_numbers = #tpu.dot_dimension_numbers<[1], [0], [0], [1], [0, 0, 1, 1], [], []>} : vector<8x800xbf16>, vector<800x128xbf16>, vector<8x128xf32> -> vector<8x128xf32>
    %7 = arith.maximumf %3, %6 : vector<8x128xf32>
    %c2 = arith.constant 2 : index
    %c0_7 = arith.constant 0 : index
    %c0_8 = arith.constant 0 : index
    %8 = vector.load %arg1[%c2, %c0_7, %c0_8] : memref<4x8x800xbf16, #tpu.memory_space<vmem>>, vector<1x8x800xbf16>
    %9 = vector.shape_cast %8 : vector<1x8x800xbf16> to vector<8x800xbf16>
    %cst_9 = arith.constant dense<0.000000e+00> : vector<8x128xf32>
    %10 = tpu.matmul %9, %0, %cst_9 {dimension_numbers = #tpu.dot_dimension_numbers<[1], [0], [0], [1], [0, 0, 1, 1], [], []>} : vector<8x800xbf16>, vector<800x128xbf16>, vector<8x128xf32> -> vector<8x128xf32>
    %c3 = arith.constant 3 : index
    %c0_10 = arith.constant 0 : index
    %c0_11 = arith.constant 0 : index
    %11 = vector.load %arg1[%c3, %c0_10, %c0_11] : memref<4x8x800xbf16, #tpu.memory_space<vmem>>, vector<1x8x800xbf16>
    %12 = vector.shape_cast %11 : vector<1x8x800xbf16> to vector<8x800xbf16>
    %cst_12 = arith.constant dense<0.000000e+00> : vector<8x128xf32>
    %13 = tpu.matmul %12, %0, %cst_12 {dimension_numbers = #tpu.dot_dimension_numbers<[1], [0], [0], [1], [0, 0, 1, 1], [], []>} : vector<8x800xbf16>, vector<800x128xbf16>, vector<8x128xf32> -> vector<8x128xf32>
    %14 = arith.maximumf %10, %13 : vector<8x128xf32>
    %15 = arith.maximumf %7, %14 : vector<8x128xf32>
    %c0_13 = arith.constant 0 : index
    %c0_14 = arith.constant 0 : index
    %16 = vector.load %arg3[%c0_13, %c0_14] : memref<1x128xf32, #tpu.memory_space<vmem>>, vector<1x128xf32>
    %17 = vector.broadcast %16 : vector<1x128xf32> to vector<8x128xf32>
    %18 = arith.addf %15, %17 : vector<8x128xf32>
    %cst_15 = arith.constant 0.000000e+00 : f32
    %19 = vector.broadcast %cst_15 : f32 to vector<8x128xf32>
    %20 = arith.maximumf %18, %19 : vector<8x128xf32>
    %c0_16 = arith.constant 0 : index
    %c0_17 = arith.constant 0 : index
    %21 = vector.load %arg4[%c0_16, %c0_17] : memref<8x128xf32, #tpu.memory_space<vmem>>, vector<8x128xf32>
    tpu.vector_store %arg4[%c0_16, %c0_17], %20 {strides = array<i32>} : memref<8x128xf32, #tpu.memory_space<vmem>>, vector<8x128xf32>,
    return
  }
  func.func @transform_0(%arg0: i32) -> (i32, i32, i32) {
    %c0_i32 = arith.constant 0 : i32
    %c0_i32_0 = arith.constant 0 : i32
    %c0_i32_1 = arith.constant 0 : i32
    return %c0_i32, %arg0, %c0_i32_0 : i32, i32, i32
  }
  func.func @transform_1(%arg0: i32) -> (i32, i32) {
    %c0_i32 = arith.constant 0 : i32
    %c0_i32_0 = arith.constant 0 : i32
    %c0_i32_1 = arith.constant 0 : i32
    return %c0_i32, %c0_i32_0 : i32, i32
  }
  func.func @transform_2(%arg0: i32) -> (i32, i32) {
    %c0_i32 = arith.constant 0 : i32
    %c0_i32_0 = arith.constant 0 : i32
    %c0_i32_1 = arith.constant 0 : i32
    return %c0_i32, %c0_i32_0 : i32, i32
  }
  func.func @transform_3(%arg0: i32) -> (i32, i32) {
    %c0_i32 = arith.constant 0 : i32
    %c0_i32_0 = arith.constant 0 : i32
    return %arg0, %c0_i32 : i32, i32
  }
}

module attributes {stable_mosaic.version = 11 : i64} {
  func.func @fc_tail_kernel(%arg0: memref<2x512xf32, #tpu.memory_space<vmem>>, %arg1: memref<512x100xbf16, #tpu.memory_space<vmem>>, %arg2: memref<1x100xf32, #tpu.memory_space<vmem>>, %arg3: memref<100x10xbf16, #tpu.memory_space<vmem>>, %arg4: memref<1x10xf32, #tpu.memory_space<vmem>>, %arg5: memref<2x10xf32, #tpu.memory_space<vmem>>) attributes {dimension_semantics = [], scalar_prefetch = 0 : i64, scratch_operands = 0 : i64, tpu.core_type = #tpu.core_type<tc>} {
    %c0 = arith.constant 0 : index
    %c0_0 = arith.constant 0 : index
    %0 = vector.load %arg1[%c0, %c0_0] : memref<512x100xbf16, #tpu.memory_space<vmem>>, vector<512x100xbf16>
    %c0_1 = arith.constant 0 : index
    %c0_2 = arith.constant 0 : index
    %1 = vector.load %arg0[%c0_1, %c0_2] : memref<2x512xf32, #tpu.memory_space<vmem>>, vector<2x512xf32>
    %2 = arith.truncf %1 : vector<2x512xf32> to vector<2x512xbf16>
    %cst = arith.constant dense<0.000000e+00> : vector<2x100xf32>
    %3 = tpu.matmul %2, %0, %cst {dimension_numbers = #tpu.dot_dimension_numbers<[1], [0], [0], [1], [0, 0, 1, 1], [], []>} : vector<2x512xbf16>, vector<512x100xbf16>, vector<2x100xf32> -> vector<2x100xf32>
    %c0_3 = arith.constant 0 : index
    %c0_4 = arith.constant 0 : index
    %4 = vector.load %arg2[%c0_3, %c0_4] : memref<1x100xf32, #tpu.memory_space<vmem>>, vector<1x100xf32>
    %5 = vector.broadcast %4 : vector<1x100xf32> to vector<2x100xf32>
    %6 = arith.addf %3, %5 : vector<2x100xf32>
    %cst_5 = arith.constant 0.000000e+00 : f32
    %7 = vector.broadcast %cst_5 : f32 to vector<2x100xf32>
    %8 = arith.maximumf %6, %7 : vector<2x100xf32>
    %c0_6 = arith.constant 0 : index
    %c0_7 = arith.constant 0 : index
    %9 = vector.load %arg3[%c0_6, %c0_7] : memref<100x10xbf16, #tpu.memory_space<vmem>>, vector<100x10xbf16>
    %10 = arith.truncf %8 : vector<2x100xf32> to vector<2x100xbf16>
    %cst_8 = arith.constant dense<0.000000e+00> : vector<2x10xf32>
    %11 = tpu.matmul %10, %9, %cst_8 {dimension_numbers = #tpu.dot_dimension_numbers<[1], [0], [0], [1], [0, 0, 1, 1], [], []>} : vector<2x100xbf16>, vector<100x10xbf16>, vector<2x10xf32> -> vector<2x10xf32>
    %c0_9 = arith.constant 0 : index
    %c0_10 = arith.constant 0 : index
    %12 = vector.load %arg4[%c0_9, %c0_10] : memref<1x10xf32, #tpu.memory_space<vmem>>, vector<1x10xf32>
    %13 = vector.broadcast %12 : vector<1x10xf32> to vector<2x10xf32>
    %14 = arith.addf %11, %13 : vector<2x10xf32>
    %cst_11 = arith.constant 0.000000e+00 : f32
    %15 = vector.broadcast %cst_11 : f32 to vector<2x10xf32>
    %16 = arith.maximumf %14, %15 : vector<2x10xf32>
    %cst_12 = arith.constant dense<0xFF800000> : vector<2xf32>
    %17 = vector.multi_reduction <maximumf>, %16, %cst_12 [1] : vector<2x10xf32> to vector<2xf32>
    %18 = vector.shape_cast %17 : vector<2xf32> to vector<2x1xf32>
    %19 = vector.broadcast %18 : vector<2x1xf32> to vector<2x10xf32>
    %20 = arith.subf %16, %19 : vector<2x10xf32>
    %21 = math.exp %20 : vector<2x10xf32>
    %cst_13 = arith.constant dense<0.000000e+00> : vector<2xf32>
    %22 = vector.multi_reduction <add>, %21, %cst_13 [1] : vector<2x10xf32> to vector<2xf32>
    %23 = vector.shape_cast %22 : vector<2xf32> to vector<2x1xf32>
    %24 = math.log %23 : vector<2x1xf32>
    %25 = vector.broadcast %24 : vector<2x1xf32> to vector<2x10xf32>
    %26 = arith.subf %20, %25 : vector<2x10xf32>
    %c0_14 = arith.constant 0 : index
    %c0_15 = arith.constant 0 : index
    %27 = vector.load %arg5[%c0_14, %c0_15] : memref<2x10xf32, #tpu.memory_space<vmem>>, vector<2x10xf32>
    tpu.vector_store %arg5[%c0_14, %c0_15], %26 {strides = array<i32>} : memref<2x10xf32, #tpu.memory_space<vmem>>, vector<2x10xf32>,
    return
  }
}

</mosaic_0001>

<llo_original>
// kernel: cnn_dilation_net_forward.3
$region0: #{cnn_dilation_net_forward.3}
  #allocation0 [shape = 'u32[]', space=smem, size = 0x4, offset = 0x4, fixed_abs, tag = 'smem constant byte address 0x4 - core index']
  #allocation1 [shape = 'u32[72,128]{1,0:T(1,128)}', space=vmem, size = 0x9000, scoped, tag = 'internal scratch']
  %s0 = inlined_call_operand.vmem [shape: bf16[4,128,49], index: 0, kind: input, shape index: {}]
  %s1 = inlined_call_operand.vmem [shape: bf16[49,32], index: 1, kind: input, shape index: {}]
  %s2 = inlined_call_operand.vmem [shape: f32[1,32], index: 2, kind: input, shape index: {}]
  %s3 = inlined_call_operand.vmem [shape: f32[128,32], index: 3, kind: output, shape index: {}]
  %s4 = sld [smem:[#allocation0]]
  $region22: #{cnn_dilation_net_forward.3} parent=0
    _
  %s6 = ssub.s32 1, %s4
  %s7 = scalar_select 0, %s6, %s4
  // Predicated region
  $region2: #{cnn_dilation_net_forward.3} parent=0 // pred_check
    _
  $region3: #{cnn_dilation_net_forward.3} parent=0 // pred_check_branch
    %9 = sbr.rel (0) target = $region5
  $region4: #{cnn_dilation_net_forward.3} parent=0 // pred_region
    _
  $region5: #{cnn_dilation_net_forward.3} parent=0 // pred_fallthru
    _
  // Predicated region
  $region6: #{cnn_dilation_net_forward.3} parent=0 // pred_check
    _
  $region7: #{cnn_dilation_net_forward.3} parent=0 // pred_check_branch
    %11 = sbr.rel (0) target = $region9
  $region8: #{cnn_dilation_net_forward.3} parent=0 // pred_region
    _
  $region9: #{cnn_dilation_net_forward.3} parent=0 // pred_fallthru
    _
  // Predicated region
  $region10: #{cnn_dilation_net_forward.3} parent=0 // pred_check
    _
  $region11: #{cnn_dilation_net_forward.3} parent=0 // pred_check_branch
    %13 = sbr.rel (0) target = $region13
  $region12: #{cnn_dilation_net_forward.3} parent=0 // pred_region
    _
  $region13: #{cnn_dilation_net_forward.3} parent=0 // pred_fallthru
    _
  %v15 = vld [vmem:[%s1] sm:$0xf]
  %v16 = vld [vmem:[%s1 + $0x4] sm:$0xf]
  %v17 = vld [vmem:[%s1 + $0x8] sm:$0xf]
  %v18 = vld [vmem:[%s1 + $0xc] sm:$0xf]
  %v19 = vld [vmem:[%s1 + $0x10] sm:$0xf]
  %v20 = vld [vmem:[%s1 + $0x14] sm:$0xf]
  %v21 = vld [vmem:[%s1 + $0x18] sm:$0x1]
  %v22 = vld [vmem:[%s0] sm:$0xf]
  %v23 = vld [vmem:[%s0 + $0x4] sm:$0xf]
  %v24 = vld [vmem:[%s0 + $0x8] sm:$0xf]
  %v25 = vld [vmem:[%s0 + $0xc] sm:$0xf]
  %v26 = vld [vmem:[%s0 + $0x10] sm:$0xf]
  %v27 = vld [vmem:[%s0 + $0x14] sm:$0xf]
  %v28 = vld [vmem:[%s0 + $0x18] sm:$0xf]
  %v29 = vld [vmem:[%s0 + $0x1c] sm:$0xf]
  %v30 = vld [vmem:[%s0 + $0x20] sm:$0xf]
  %v31 = vld [vmem:[%s0 + $0x24] sm:$0xf]
  %v32 = vld [vmem:[%s0 + $0x28] sm:$0xf]
  %v33 = vld [vmem:[%s0 + $0x2c] sm:$0xf]
  %v34 = vld [vmem:[%s0 + $0x30] sm:$0xf]
  %v35 = vld [vmem:[%s0 + $0x34] sm:$0xf]
  %v36 = vld [vmem:[%s0 + $0x38] sm:$0xf]
  %v37 = vld [vmem:[%s0 + $0x3c] sm:$0xf]
  %v54 = vunpack.c.l.b16 %v22
  %v55 = vunpack.c.l.b16 %v23
  %v56 = vunpack.c.l.b16 %v24
  %v57 = vunpack.c.l.b16 %v25
  %v58 = vunpack.c.l.b16 %v26
  %v59 = vunpack.c.l.b16 %v27
  %v60 = vunpack.c.l.b16 %v28
  %v61 = vunpack.c.l.b16 %v29
  %v62 = vunpack.c.l.b16 %v30
  %v63 = vunpack.c.l.b16 %v31
  %v64 = vunpack.c.l.b16 %v32
  %v65 = vunpack.c.l.b16 %v33
  %v66 = vunpack.c.l.b16 %v34
  %v67 = vunpack.c.l.b16 %v35
  %v68 = vunpack.c.l.b16 %v36
  %v69 = vunpack.c.l.b16 %v37
  %v70 = vpack.c.b16 %v55, %v54
  %v71 = vpack.c.b16 %v57, %v56
  %v72 = vpack.c.b16 %v59, %v58
  %v73 = vpack.c.b16 %v61, %v60
  %v74 = vpack.c.b16 %v63, %v62
  %v75 = vpack.c.b16 %v65, %v64
  %v76 = vpack.c.b16 %v67, %v66
  %v77 = vpack.c.b16 %v69, %v68
  %v85 = vunpack.c.l.b16 %v15
  %v86 = vunpack.c.l.b16 %v16
  %v87 = vunpack.c.l.b16 %v17
  %v88 = vunpack.c.l.b16 %v18
  %v89 = vunpack.c.l.b16 %v19
  %v90 = vunpack.c.l.b16 %v20
  %v91 = vunpack.c.l.b16 %v21
  %v92 = vpack.c.b16 %v86, %v85
  %v93 = vpack.c.b16 %v88, %v87
  %v94 = vpack.c.b16 %v90, %v89
  %v95 = vpack.c.b16 %v91, %v91
  %vm99 = vcmask 400384
  %v101 = vsel %vm99, %v70, 0
  %v104 = vsel %vm99, %v71, 0
  %v107 = vsel %vm99, %v72, 0
  %v110 = vsel %vm99, %v73, 0
  %v113 = vsel %vm99, %v74, 0
  %v116 = vsel %vm99, %v75, 0
  %v119 = vsel %vm99, %v76, 0
  %v122 = vsel %vm99, %v77, 0
  %vm124 = vcmask 1040384
  %v125 = vsel 0, 4294967295, 65535
  %v126 = vsel %vm124, %v125, 0
  %v128 = vand.u32 %v95, %v126
  %130 = vmatpush.bf16.msra.mxu0 0
  %131 = vmatpush.bf16.msra.mxu0 0
  %132 = vmatpush.bf16.msra.mxu0 0
  %133 = vmatpush.bf16.msra.mxu0 0
  %134 = vmatpush.bf16.msra.mxu0 %v128
  %135 = vmatpush.bf16.msra.mxu0 %v94
  %136 = vmatpush.bf16.msra.mxu0 %v93
  %137 = vmatpush.bf16.msra.mxu0 %v92
  %138 = vmatmul.bf16.gmra.mxu0 %v101
  %v139 = vpop.f32.mrf.mxu0
  %v140 = vadd.f32 0.0, %v139
  %v141 = vpop.f32.mrf.mxu0
  %v142 = vadd.f32 0.0, %v141
  %143 = vmatmul.bf16.gmra.mxu0 %v104
  %v144 = vpop.f32.mrf.mxu0
  %v145 = vadd.f32 0.0, %v144
  %v146 = vpop.f32.mrf.mxu0
  %v147 = vadd.f32 0.0, %v146
  %148 = vmatmul.bf16.gmra.mxu0 %v107
  %v149 = vpop.f32.mrf.mxu0
  %v150 = vadd.f32 0.0, %v149
  %v151 = vpop.f32.mrf.mxu0
  %v152 = vadd.f32 0.0, %v151
  %153 = vmatmul.bf16.gmra.mxu0 %v110
  %v154 = vpop.f32.mrf.mxu0
  %v155 = vadd.f32 0.0, %v154
  %v156 = vpop.f32.mrf.mxu0
  %v157 = vadd.f32 0.0, %v156
  %158 = vmatmul.bf16.gmra.mxu0 %v113
  %v159 = vpop.f32.mrf.mxu0
  %v160 = vadd.f32 0.0, %v159
  %v161 = vpop.f32.mrf.mxu0
  %v162 = vadd.f32 0.0, %v161
  %163 = vmatmul.bf16.gmra.mxu0 %v116
  %v164 = vpop.f32.mrf.mxu0
  %v165 = vadd.f32 0.0, %v164
  %v166 = vpop.f32.mrf.mxu0
  %v167 = vadd.f32 0.0, %v166
  %168 = vmatmul.bf16.gmra.mxu0 %v119
  %v169 = vpop.f32.mrf.mxu0
  %v170 = vadd.f32 0.0, %v169
  %v171 = vpop.f32.mrf.mxu0
  %v172 = vadd.f32 0.0, %v171
  %173 = vmatmul.bf16.gmra.mxu0 %v122
  %v174 = vpop.f32.mrf.mxu0
  %v175 = vadd.f32 0.0, %v174
  %v176 = vpop.f32.mrf.mxu0
  %v177 = vadd.f32 0.0, %v176
  %178 = vdwg.mxu0
  %s179 = scalar_lea.vmem %s0, 64
  %v180 = vld [vmem:[%s179] sm:$0xf]
  %v181 = vld [vmem:[%s179 + $0x4] sm:$0xf]
  %v182 = vld [vmem:[%s179 + $0x8] sm:$0xf]
  %v183 = vld [vmem:[%s179 + $0xc] sm:$0xf]
  %v184 = vld [vmem:[%s179 + $0x10] sm:$0xf]
  %v185 = vld [vmem:[%s179 + $0x14] sm:$0xf]
  %v186 = vld [vmem:[%s179 + $0x18] sm:$0xf]
  %v187 = vld [vmem:[%s179 + $0x1c] sm:$0xf]
  %v188 = vld [vmem:[%s179 + $0x20] sm:$0xf]
  %v189 = vld [vmem:[%s179 + $0x24] sm:$0xf]
  %v190 = vld [vmem:[%s179 + $0x28] sm:$0xf]
  %v191 = vld [vmem:[%s179 + $0x2c] sm:$0xf]
  %v192 = vld [vmem:[%s179 + $0x30] sm:$0xf]
  %v193 = vld [vmem:[%s179 + $0x34] sm:$0xf]
  %v194 = vld [vmem:[%s179 + $0x38] sm:$0xf]
  %v195 = vld [vmem:[%s179 + $0x3c] sm:$0xf]
  %v212 = vunpack.c.l.b16 %v180
  %v213 = vunpack.c.l.b16 %v181
  %v214 = vunpack.c.l.b16 %v182
  %v215 = vunpack.c.l.b16 %v183
  %v216 = vunpack.c.l.b16 %v184
  %v217 = vunpack.c.l.b16 %v185
  %v218 = vunpack.c.l.b16 %v186
  %v219 = vunpack.c.l.b16 %v187
  %v220 = vunpack.c.l.b16 %v188
  %v221 = vunpack.c.l.b16 %v189
  %v222 = vunpack.c.l.b16 %v190
  %v223 = vunpack.c.l.b16 %v191
  %v224 = vunpack.c.l.b16 %v192
  %v225 = vunpack.c.l.b16 %v193
  %v226 = vunpack.c.l.b16 %v194
  %v227 = vunpack.c.l.b16 %v195
  %v228 = vpack.c.b16 %v213, %v212
  %v229 = vpack.c.b16 %v215, %v214
  %v230 = vpack.c.b16 %v217, %v216
  %v231 = vpack.c.b16 %v219, %v218
  %v232 = vpack.c.b16 %v221, %v220
  %v233 = vpack.c.b16 %v223, %v222
  %v234 = vpack.c.b16 %v225, %v224
  %v235 = vpack.c.b16 %v227, %v226
  %v237 = vsel %vm99, %v228, 0
  %v240 = vsel %vm99, %v229, 0
  %v243 = vsel %vm99, %v230, 0
  %v246 = vsel %vm99, %v231, 0
  %v249 = vsel %vm99, %v232, 0
  %v252 = vsel %vm99, %v233, 0
  %v255 = vsel %vm99, %v234, 0
  %v258 = vsel %vm99, %v235, 0
  %260 = vmatpush.bf16.msra.mxu0 0
  %261 = vmatpush.bf16.msra.mxu0 0
  %262 = vmatpush.bf16.msra.mxu0 0
  %263 = vmatpush.bf16.msra.mxu0 0
  %264 = vmatpush.bf16.msra.mxu0 %v128
  %265 = vmatpush.bf16.msra.mxu0 %v94
  %266 = vmatpush.bf16.msra.mxu0 %v93
  %267 = vmatpush.bf16.msra.mxu0 %v92
  %268 = vmatmul.bf16.gmra.mxu0 %v237
  %v269 = vpop.f32.mrf.mxu0
  %v270 = vadd.f32 0.0, %v269
  %v271 = vpop.f32.mrf.mxu0
  %v272 = vadd.f32 0.0, %v271
  %273 = vmatmul.bf16.gmra.mxu0 %v240
  %v274 = vpop.f32.mrf.mxu0
  %v275 = vadd.f32 0.0, %v274
  %v276 = vpop.f32.mrf.mxu0
  %v277 = vadd.f32 0.0, %v276
  %278 = vmatmul.bf16.gmra.mxu0 %v243
  %v279 = vpop.f32.mrf.mxu0
  %v280 = vadd.f32 0.0, %v279
  %v281 = vpop.f32.mrf.mxu0
  %v282 = vadd.f32 0.0, %v281
  %283 = vmatmul.bf16.gmra.mxu0 %v246
  %v284 = vpop.f32.mrf.mxu0
  %v285 = vadd.f32 0.0, %v284
  %v286 = vpop.f32.mrf.mxu0
  %v287 = vadd.f32 0.0, %v286
  %288 = vmatmul.bf16.gmra.mxu0 %v249
  %v289 = vpop.f32.mrf.mxu0
  %v290 = vadd.f32 0.0, %v289
  %v291 = vpop.f32.mrf.mxu0
  %v292 = vadd.f32 0.0, %v291
  %293 = vmatmul.bf16.gmra.mxu0 %v252
  %v294 = vpop.f32.mrf.mxu0
  %v295 = vadd.f32 0.0, %v294
  %v296 = vpop.f32.mrf.mxu0
  %v297 = vadd.f32 0.0, %v296
  %298 = vmatmul.bf16.gmra.mxu0 %v255
  %v299 = vpop.f32.mrf.mxu0
  %v300 = vadd.f32 0.0, %v299
  %v301 = vpop.f32.mrf.mxu0
  %v302 = vadd.f32 0.0, %v301
  %303 = vmatmul.bf16.gmra.mxu0 %v258
  %v304 = vpop.f32.mrf.mxu0
  %v305 = vadd.f32 0.0, %v304
  %v306 = vpop.f32.mrf.mxu0
  %v307 = vadd.f32 0.0, %v306
  %308 = vdwg.mxu0
  %v309 = vmax.f32 %v140, %v270
  %v310 = vmax.f32 %v142, %v272
  %v311 = vmax.f32 %v145, %v275
  %v312 = vmax.f32 %v147, %v277
  %v313 = vmax.f32 %v150, %v280
  %v314 = vmax.f32 %v152, %v282
  %v315 = vmax.f32 %v155, %v285
  %v316 = vmax.f32 %v157, %v287
  %v317 = vmax.f32 %v160, %v290
  %v318 = vmax.f32 %v162, %v292
  %v319 = vmax.f32 %v165, %v295
  %v320 = vmax.f32 %v167, %v297
  %v321 = vmax.f32 %v170, %v300
  %v322 = vmax.f32 %v172, %v302
  %v323 = vmax.f32 %v175, %v305
  %v324 = vmax.f32 %v177, %v307
  %s325 = scalar_lea.vmem %s0, 128
  %v326 = vld [vmem:[%s325] sm:$0xf]
  %v327 = vld [vmem:[%s325 + $0x4] sm:$0xf]
  %v328 = vld [vmem:[%s325 + $0x8] sm:$0xf]
  %v329 = vld [vmem:[%s325 + $0xc] sm:$0xf]
  %v330 = vld [vmem:[%s325 + $0x10] sm:$0xf]
  %v331 = vld [vmem:[%s325 + $0x14] sm:$0xf]
  %v332 = vld [vmem:[%s325 + $0x18] sm:$0xf]
  %v333 = vld [vmem:[%s325 + $0x1c] sm:$0xf]
  %v334 = vld [vmem:[%s325 + $0x20] sm:$0xf]
  %v335 = vld [vmem:[%s325 + $0x24] sm:$0xf]
  %v336 = vld [vmem:[%s325 + $0x28] sm:$0xf]
  %v337 = vld [vmem:[%s325 + $0x2c] sm:$0xf]
  %v338 = vld [vmem:[%s325 + $0x30] sm:$0xf]
  %v339 = vld [vmem:[%s325 + $0x34] sm:$0xf]
  %v340 = vld [vmem:[%s325 + $0x38] sm:$0xf]
  %v341 = vld [vmem:[%s325 + $0x3c] sm:$0xf]
  %v358 = vunpack.c.l.b16 %v326
  %v359 = vunpack.c.l.b16 %v327
  %v360 = vunpack.c.l.b16 %v328
  %v361 = vunpack.c.l.b16 %v329
  %v362 = vunpack.c.l.b16 %v330
  %v363 = vunpack.c.l.b16 %v331
  %v364 = vunpack.c.l.b16 %v332
  %v365 = vunpack.c.l.b16 %v333
  %v366 = vunpack.c.l.b16 %v334
  %v367 = vunpack.c.l.b16 %v335
  %v368 = vunpack.c.l.b16 %v336
  %v369 = vunpack.c.l.b16 %v337
  %v370 = vunpack.c.l.b16 %v338
  %v371 = vunpack.c.l.b16 %v339
  %v372 = vunpack.c.l.b16 %v340
  %v373 = vunpack.c.l.b16 %v341
  %v374 = vpack.c.b16 %v359, %v358
  %v375 = vpack.c.b16 %v361, %v360
  %v376 = vpack.c.b16 %v363, %v362
  %v377 = vpack.c.b16 %v365, %v364
  %v378 = vpack.c.b16 %v367, %v366
  %v379 = vpack.c.b16 %v369, %v368
  %v380 = vpack.c.b16 %v371, %v370
  %v381 = vpack.c.b16 %v373, %v372
  %v383 = vsel %vm99, %v374, 0
  %v386 = vsel %vm99, %v375, 0
  %v389 = vsel %vm99, %v376, 0
  %v392 = vsel %vm99, %v377, 0
  %v395 = vsel %vm99, %v378, 0
  %v398 = vsel %vm99, %v379, 0
  %v401 = vsel %vm99, %v380, 0
  %v404 = vsel %vm99, %v381, 0
  %406 = vmatpush.bf16.msra.mxu0 0
  %407 = vmatpush.bf16.msra.mxu0 0
  %408 = vmatpush.bf16.msra.mxu0 0
  %409 = vmatpush.bf16.msra.mxu0 0
  %410 = vmatpush.bf16.msra.mxu0 %v128
  %411 = vmatpush.bf16.msra.mxu0 %v94
  %412 = vmatpush.bf16.msra.mxu0 %v93
  %413 = vmatpush.bf16.msra.mxu0 %v92
  %414 = vmatmul.bf16.gmra.mxu0 %v383
  %v415 = vpop.f32.mrf.mxu0
  %v416 = vadd.f32 0.0, %v415
  %v417 = vpop.f32.mrf.mxu0
  %v418 = vadd.f32 0.0, %v417
  %419 = vmatmul.bf16.gmra.mxu0 %v386
  %v420 = vpop.f32.mrf.mxu0
  %v421 = vadd.f32 0.0, %v420
  %v422 = vpop.f32.mrf.mxu0
  %v423 = vadd.f32 0.0, %v422
  %424 = vmatmul.bf16.gmra.mxu0 %v389
  %v425 = vpop.f32.mrf.mxu0
  %v426 = vadd.f32 0.0, %v425
  %v427 = vpop.f32.mrf.mxu0
  %v428 = vadd.f32 0.0, %v427
  %429 = vmatmul.bf16.gmra.mxu0 %v392
  %v430 = vpop.f32.mrf.mxu0
  %v431 = vadd.f32 0.0, %v430
  %v432 = vpop.f32.mrf.mxu0
  %v433 = vadd.f32 0.0, %v432
  %434 = vmatmul.bf16.gmra.mxu0 %v395
  %v435 = vpop.f32.mrf.mxu0
  %v436 = vadd.f32 0.0, %v435
  %v437 = vpop.f32.mrf.mxu0
  %v438 = vadd.f32 0.0, %v437
  %439 = vmatmul.bf16.gmra.mxu0 %v398
  %v440 = vpop.f32.mrf.mxu0
  %v441 = vadd.f32 0.0, %v440
  %v442 = vpop.f32.mrf.mxu0
  %v443 = vadd.f32 0.0, %v442
  %444 = vmatmul.bf16.gmra.mxu0 %v401
  %v445 = vpop.f32.mrf.mxu0
  %v446 = vadd.f32 0.0, %v445
  %v447 = vpop.f32.mrf.mxu0
  %v448 = vadd.f32 0.0, %v447
  %449 = vmatmul.bf16.gmra.mxu0 %v404
  %v450 = vpop.f32.mrf.mxu0
  %v451 = vadd.f32 0.0, %v450
  %v452 = vpop.f32.mrf.mxu0
  %v453 = vadd.f32 0.0, %v452
  %454 = vdwg.mxu0
  %s455 = scalar_lea.vmem %s0, 192
  %v456 = vld [vmem:[%s455] sm:$0xf]
  %v457 = vld [vmem:[%s455 + $0x4] sm:$0xf]
  %v458 = vld [vmem:[%s455 + $0x8] sm:$0xf]
  %v459 = vld [vmem:[%s455 + $0xc] sm:$0xf]
  %v460 = vld [vmem:[%s455 + $0x10] sm:$0xf]
  %v461 = vld [vmem:[%s455 + $0x14] sm:$0xf]
  %v462 = vld [vmem:[%s455 + $0x18] sm:$0xf]
  %v463 = vld [vmem:[%s455 + $0x1c] sm:$0xf]
  %v464 = vld [vmem:[%s455 + $0x20] sm:$0xf]
  %v465 = vld [vmem:[%s455 + $0x24] sm:$0xf]
  %v466 = vld [vmem:[%s455 + $0x28] sm:$0xf]
  %v467 = vld [vmem:[%s455 + $0x2c] sm:$0xf]
  %v468 = vld [vmem:[%s455 + $0x30] sm:$0xf]
  %v469 = vld [vmem:[%s455 + $0x34] sm:$0xf]
  %v470 = vld [vmem:[%s455 + $0x38] sm:$0xf]
  %v471 = vld [vmem:[%s455 + $0x3c] sm:$0xf]
  %v488 = vunpack.c.l.b16 %v456
  %v489 = vunpack.c.l.b16 %v457
  %v490 = vunpack.c.l.b16 %v458
  %v491 = vunpack.c.l.b16 %v459
  %v492 = vunpack.c.l.b16 %v460
  %v493 = vunpack.c.l.b16 %v461
  %v494 = vunpack.c.l.b16 %v462
  %v495 = vunpack.c.l.b16 %v463
  %v496 = vunpack.c.l.b16 %v464
  %v497 = vunpack.c.l.b16 %v465
  %v498 = vunpack.c.l.b16 %v466
  %v499 = vunpack.c.l.b16 %v467
  %v500 = vunpack.c.l.b16 %v468
  %v501 = vunpack.c.l.b16 %v469
  %v502 = vunpack.c.l.b16 %v470
  %v503 = vunpack.c.l.b16 %v471
  %v504 = vpack.c.b16 %v489, %v488
  %v505 = vpack.c.b16 %v491, %v490
  %v506 = vpack.c.b16 %v493, %v492
  %v507 = vpack.c.b16 %v495, %v494
  %v508 = vpack.c.b16 %v497, %v496
  %v509 = vpack.c.b16 %v499, %v498
  %v510 = vpack.c.b16 %v501, %v500
  %v511 = vpack.c.b16 %v503, %v502
  %v513 = vsel %vm99, %v504, 0
  %v516 = vsel %vm99, %v505, 0
  %v519 = vsel %vm99, %v506, 0
  %v522 = vsel %vm99, %v507, 0
  %v525 = vsel %vm99, %v508, 0
  %v528 = vsel %vm99, %v509, 0
  %v531 = vsel %vm99, %v510, 0
  %v534 = vsel %vm99, %v511, 0
  %536 = vmatpush.bf16.msra.mxu0 0
  %537 = vmatpush.bf16.msra.mxu0 0
  %538 = vmatpush.bf16.msra.mxu0 0
  %539 = vmatpush.bf16.msra.mxu0 0
  %540 = vmatpush.bf16.msra.mxu0 %v128
  %541 = vmatpush.bf16.msra.mxu0 %v94
  %542 = vmatpush.bf16.msra.mxu0 %v93
  %543 = vmatpush.bf16.msra.mxu0 %v92
  %544 = vmatmul.bf16.gmra.mxu0 %v513
  %v545 = vpop.f32.mrf.mxu0
  %v546 = vadd.f32 0.0, %v545
  %v547 = vpop.f32.mrf.mxu0
  %v548 = vadd.f32 0.0, %v547
  %549 = vmatmul.bf16.gmra.mxu0 %v516
  %v550 = vpop.f32.mrf.mxu0
  %v551 = vadd.f32 0.0, %v550
  %v552 = vpop.f32.mrf.mxu0
  %v553 = vadd.f32 0.0, %v552
  %554 = vmatmul.bf16.gmra.mxu0 %v519
  %v555 = vpop.f32.mrf.mxu0
  %v556 = vadd.f32 0.0, %v555
  %v557 = vpop.f32.mrf.mxu0
  %v558 = vadd.f32 0.0, %v557
  %559 = vmatmul.bf16.gmra.mxu0 %v522
  %v560 = vpop.f32.mrf.mxu0
  %v561 = vadd.f32 0.0, %v560
  %v562 = vpop.f32.mrf.mxu0
  %v563 = vadd.f32 0.0, %v562
  %564 = vmatmul.bf16.gmra.mxu0 %v525
  %v565 = vpop.f32.mrf.mxu0
  %v566 = vadd.f32 0.0, %v565
  %v567 = vpop.f32.mrf.mxu0
  %v568 = vadd.f32 0.0, %v567
  %569 = vmatmul.bf16.gmra.mxu0 %v528
  %v570 = vpop.f32.mrf.mxu0
  %v571 = vadd.f32 0.0, %v570
  %v572 = vpop.f32.mrf.mxu0
  %v573 = vadd.f32 0.0, %v572
  %574 = vmatmul.bf16.gmra.mxu0 %v531
  %v575 = vpop.f32.mrf.mxu0
  %v576 = vadd.f32 0.0, %v575
  %v577 = vpop.f32.mrf.mxu0
  %v578 = vadd.f32 0.0, %v577
  %579 = vmatmul.bf16.gmra.mxu0 %v534
  %v580 = vpop.f32.mrf.mxu0
  %v581 = vadd.f32 0.0, %v580
  %v582 = vpop.f32.mrf.mxu0
  %v583 = vadd.f32 0.0, %v582
  %584 = vdwg.mxu0
  %v585 = vmax.f32 %v416, %v546
  %v586 = vmax.f32 %v418, %v548
  %v587 = vmax.f32 %v421, %v551
  %v588 = vmax.f32 %v423, %v553
  %v589 = vmax.f32 %v426, %v556
  %v590 = vmax.f32 %v428, %v558
  %v591 = vmax.f32 %v431, %v561
  %v592 = vmax.f32 %v433, %v563
  %v593 = vmax.f32 %v436, %v566
  %v594 = vmax.f32 %v438, %v568
  %v595 = vmax.f32 %v441, %v571
  %v596 = vmax.f32 %v443, %v573
  %v597 = vmax.f32 %v446, %v576
  %v598 = vmax.f32 %v448, %v578
  %v599 = vmax.f32 %v451, %v581
  %v600 = vmax.f32 %v453, %v583
  %v601 = vmax.f32 %v309, %v585
  %v602 = vmax.f32 %v310, %v586
  %v603 = vmax.f32 %v311, %v587
  %v604 = vmax.f32 %v312, %v588
  %v605 = vmax.f32 %v313, %v589
  %v606 = vmax.f32 %v314, %v590
  %v607 = vmax.f32 %v315, %v591
  %v608 = vmax.f32 %v316, %v592
  %v609 = vmax.f32 %v317, %v593
  %v610 = vmax.f32 %v318, %v594
  %v611 = vmax.f32 %v319, %v595
  %v612 = vmax.f32 %v320, %v596
  %v613 = vmax.f32 %v321, %v597
  %v614 = vmax.f32 %v322, %v598
  %v615 = vmax.f32 %v323, %v599
  %v616 = vmax.f32 %v324, %v600
  %v617 = vld [vmem:[%s2] sm:$0x1]
  %v619 = vperm.slane %v617, 0
  %v621 = vadd.f32 %v601, %v619
  %v622 = vadd.f32 %v602, %v619
  %v623 = vadd.f32 %v603, %v619
  %v624 = vadd.f32 %v604, %v619
  %v625 = vadd.f32 %v605, %v619
  %v626 = vadd.f32 %v606, %v619
  %v627 = vadd.f32 %v607, %v619
  %v628 = vadd.f32 %v608, %v619
  %v629 = vadd.f32 %v609, %v619
  %v630 = vadd.f32 %v610, %v619
  %v631 = vadd.f32 %v611, %v619
  %v632 = vadd.f32 %v612, %v619
  %v633 = vadd.f32 %v613, %v619
  %v634 = vadd.f32 %v614, %v619
  %v635 = vadd.f32 %v615, %v619
  %v636 = vadd.f32 %v616, %v619
  %v637 = vmax.f32 %v621, 0.0
  %v638 = vmax.f32 %v622, 0.0
  %v639 = vmax.f32 %v623, 0.0
  %v640 = vmax.f32 %v624, 0.0
  %v641 = vmax.f32 %v625, 0.0
  %v642 = vmax.f32 %v626, 0.0
  %v643 = vmax.f32 %v627, 0.0
  %v644 = vmax.f32 %v628, 0.0
  %v645 = vmax.f32 %v629, 0.0
  %v646 = vmax.f32 %v630, 0.0
  %v647 = vmax.f32 %v631, 0.0
  %v648 = vmax.f32 %v632, 0.0
  %v649 = vmax.f32 %v633, 0.0
  %v650 = vmax.f32 %v634, 0.0
  %v651 = vmax.f32 %v635, 0.0
  %v652 = vmax.f32 %v636, 0.0
  %vm653 = vcmask 261120
  %654 = vst.msk [vmem:[%s3] sm:$0xff] %vm653, %v637
  %655 = vst.msk [vmem:[%s3 + $0x8] sm:$0xff] %vm653, %v638
  %656 = vst.msk [vmem:[%s3 + $0x10] sm:$0xff] %vm653, %v639
  %657 = vst.msk [vmem:[%s3 + $0x18] sm:$0xff] %vm653, %v640
  %658 = vst.msk [vmem:[%s3 + $0x20] sm:$0xff] %vm653, %v641
  %659 = vst.msk [vmem:[%s3 + $0x28] sm:$0xff] %vm653, %v642
  %660 = vst.msk [vmem:[%s3 + $0x30] sm:$0xff] %vm653, %v643
  %661 = vst.msk [vmem:[%s3 + $0x38] sm:$0xff] %vm653, %v644
  %662 = vst.msk [vmem:[%s3 + $0x40] sm:$0xff] %vm653, %v645
  %663 = vst.msk [vmem:[%s3 + $0x48] sm:$0xff] %vm653, %v646
  %664 = vst.msk [vmem:[%s3 + $0x50] sm:$0xff] %vm653, %v647
  %665 = vst.msk [vmem:[%s3 + $0x58] sm:$0xff] %vm653, %v648
  %666 = vst.msk [vmem:[%s3 + $0x60] sm:$0xff] %vm653, %v649
  %667 = vst.msk [vmem:[%s3 + $0x68] sm:$0xff] %vm653, %v650
  %668 = vst.msk [vmem:[%s3 + $0x70] sm:$0xff] %vm653, %v651
  %669 = vst.msk [vmem:[%s3 + $0x78] sm:$0xff] %vm653, %v652
  // Predicated region
  $region14: #{cnn_dilation_net_forward.3} parent=0 // pred_check
    _
  $region15: #{cnn_dilation_net_forward.3} parent=0 // pred_check_branch
    %671 = sbr.rel (0) target = $region17
  $region16: #{cnn_dilation_net_forward.3} parent=0 // pred_region
    _
  $region17: #{cnn_dilation_net_forward.3} parent=0 // pred_fallthru
    _
  // Predicated region
  $region18: #{cnn_dilation_net_forward.3} parent=0 // pred_check
    _
  $region19: #{cnn_dilation_net_forward.3} parent=0 // pred_check_branch
    %673 = sbr.rel (0) target = $region21
  $region20: #{cnn_dilation_net_forward.3} parent=0 // pred_region
    _
  $region21: #{cnn_dilation_net_forward.3} parent=0 // pred_fallthru
    _

// kernel: cnn_dilation_net_forward.4
$region0: #{cnn_dilation_net_forward.4}
  #allocation0 [shape = 'u32[]', space=smem, size = 0x4, offset = 0x4, fixed_abs, tag = 'smem constant byte address 0x4 - core index']
  #allocation1 [shape = 'u32[72,128]{1,0:T(1,128)}', space=vmem, size = 0x9000, scoped, tag = 'internal scratch']
  %s0 = inlined_call_operand.vmem [shape: bf16[4,8,800], index: 0, kind: input, shape index: {}]
  %s1 = inlined_call_operand.vmem [shape: bf16[800,128], index: 1, kind: input, shape index: {}]
  %s2 = inlined_call_operand.vmem [shape: f32[1,128], index: 2, kind: input, shape index: {}]
  %s3 = inlined_call_operand.vmem [shape: f32[8,128], index: 3, kind: output, shape index: {}]
  %s4 = sld [smem:[#allocation0]]
  $region22: #{cnn_dilation_net_forward.4} parent=0
    _
  %s6 = ssub.s32 1, %s4
  %s7 = scalar_select 0, %s6, %s4
  // Predicated region
  $region2: #{cnn_dilation_net_forward.4} parent=0 // pred_check
    _
  $region3: #{cnn_dilation_net_forward.4} parent=0 // pred_check_branch
    %9 = sbr.rel (0) target = $region5
  $region4: #{cnn_dilation_net_forward.4} parent=0 // pred_region
    _
  $region5: #{cnn_dilation_net_forward.4} parent=0 // pred_fallthru
    _
  // Predicated region
  $region6: #{cnn_dilation_net_forward.4} parent=0 // pred_check
    _
  $region7: #{cnn_dilation_net_forward.4} parent=0 // pred_check_branch
    %11 = sbr.rel (0) target = $region9
  $region8: #{cnn_dilation_net_forward.4} parent=0 // pred_region
    _
  $region9: #{cnn_dilation_net_forward.4} parent=0 // pred_fallthru
    _
  // Predicated region
  $region10: #{cnn_dilation_net_forward.4} parent=0 // pred_check
    _
  $region11: #{cnn_dilation_net_forward.4} parent=0 // pred_check_branch
    %13 = sbr.rel (0) target = $region13
  $region12: #{cnn_dilation_net_forward.4} parent=0 // pred_region
    _
  $region13: #{cnn_dilation_net_forward.4} parent=0 // pred_fallthru
    _
  %v15 = vld [vmem:[%s1] sm:$0xf]
  %v16 = vld [vmem:[%s1 + $0x4] sm:$0xf]
  %v17 = vld [vmem:[%s1 + $0x8] sm:$0xf]
  %v18 = vld [vmem:[%s1 + $0xc] sm:$0xf]
  %v19 = vld [vmem:[%s1 + $0x10] sm:$0xf]
  %v20 = vld [vmem:[%s1 + $0x14] sm:$0xf]
  %v21 = vld [vmem:[%s1 + $0x18] sm:$0xf]
  %v22 = vld [vmem:[%s1 + $0x1c] sm:$0xf]
  %v23 = vld [vmem:[%s1 + $0x20] sm:$0xf]
  %v24 = vld [vmem:[%s1 + $0x24] sm:$0xf]
  %v25 = vld [vmem:[%s1 + $0x28] sm:$0xf]
  %v26 = vld [vmem:[%s1 + $0x2c] sm:$0xf]
  %v27 = vld [vmem:[%s1 + $0x30] sm:$0xf]
  %v28 = vld [vmem:[%s1 + $0x34] sm:$0xf]
  %v29 = vld [vmem:[%s1 + $0x38] sm:$0xf]
  %v30 = vld [vmem:[%s1 + $0x3c] sm:$0xf]
  %v31 = vld [vmem:[%s1 + $0x40] sm:$0xf]
  %v32 = vld [vmem:[%s1 + $0x44] sm:$0xf]
  %v33 = vld [vmem:[%s1 + $0x48] sm:$0xf]
  %v34 = vld [vmem:[%s1 + $0x4c] sm:$0xf]
  %v35 = vld [vmem:[%s1 + $0x50] sm:$0xf]
  %v36 = vld [vmem:[%s1 + $0x54] sm:$0xf]
  %v37 = vld [vmem:[%s1 + $0x58] sm:$0xf]
  %v38 = vld [vmem:[%s1 + $0x5c] sm:$0xf]
  %v39 = vld [vmem:[%s1 + $0x60] sm:$0xf]
  %v40 = vld [vmem:[%s1 + $0x64] sm:$0xf]
  %v41 = vld [vmem:[%s1 + $0x68] sm:$0xf]
  %v42 = vld [vmem:[%s1 + $0x6c] sm:$0xf]
  %v43 = vld [vmem:[%s1 + $0x70] sm:$0xf]
  %v44 = vld [vmem:[%s1 + $0x74] sm:$0xf]
  %v45 = vld [vmem:[%s1 + $0x78] sm:$0xf]
  %v46 = vld [vmem:[%s1 + $0x7c] sm:$0xf]
  %v47 = vld [vmem:[%s1 + $0x80] sm:$0xf]
  %v48 = vld [vmem:[%s1 + $0x84] sm:$0xf]
  %v49 = vld [vmem:[%s1 + $0x88] sm:$0xf]
  %v50 = vld [vmem:[%s1 + $0x8c] sm:$0xf]
  %v51 = vld [vmem:[%s1 + $0x90] sm:$0xf]
  %v52 = vld [vmem:[%s1 + $0x94] sm:$0xf]
  %v53 = vld [vmem:[%s1 + $0x98] sm:$0xf]
  %v54 = vld [vmem:[%s1 + $0x9c] sm:$0xf]
  %v55 = vld [vmem:[%s1 + $0xa0] sm:$0xf]
  %v56 = vld [vmem:[%s1 + $0xa4] sm:$0xf]
  %v57 = vld [vmem:[%s1 + $0xa8] sm:$0xf]
  %v58 = vld [vmem:[%s1 + $0xac] sm:$0xf]
  %v59 = vld [vmem:[%s1 + $0xb0] sm:$0xf]
  %v60 = vld [vmem:[%s1 + $0xb4] sm:$0xf]
  %v61 = vld [vmem:[%s1 + $0xb8] sm:$0xf]
  %v62 = vld [vmem:[%s1 + $0xbc] sm:$0xf]
  %v63 = vld [vmem:[%s1 + $0xc0] sm:$0xf]
  %v64 = vld [vmem:[%s1 + $0xc4] sm:$0xf]
  %v65 = vld [vmem:[%s1 + $0xc8] sm:$0xf]
  %v66 = vld [vmem:[%s1 + $0xcc] sm:$0xf]
  %v67 = vld [vmem:[%s1 + $0xd0] sm:$0xf]
  %v68 = vld [vmem:[%s1 + $0xd4] sm:$0xf]
  %v69 = vld [vmem:[%s1 + $0xd8] sm:$0xf]
  %v70 = vld [vmem:[%s1 + $0xdc] sm:$0xf]
  %v71 = vld [vmem:[%s1 + $0xe0] sm:$0xf]
  %v72 = vld [vmem:[%s1 + $0xe4] sm:$0xf]
  %v73 = vld [vmem:[%s1 + $0xe8] sm:$0xf]
  %v74 = vld [vmem:[%s1 + $0xec] sm:$0xf]
  %v75 = vld [vmem:[%s1 + $0xf0] sm:$0xf]
  %v76 = vld [vmem:[%s1 + $0xf4] sm:$0xf]
  %v77 = vld [vmem:[%s1 + $0xf8] sm:$0xf]
  %v78 = vld [vmem:[%s1 + $0xfc] sm:$0xf]
  %v79 = vld [vmem:[%s1 + $0x100] sm:$0xf]
  %v80 = vld [vmem:[%s1 + $0x104] sm:$0xf]
  %v81 = vld [vmem:[%s1 + $0x108] sm:$0xf]
  %v82 = vld [vmem:[%s1 + $0x10c] sm:$0xf]
  %v83 = vld [vmem:[%s1 + $0x110] sm:$0xf]
  %v84 = vld [vmem:[%s1 + $0x114] sm:$0xf]
  %v85 = vld [vmem:[%s1 + $0x118] sm:$0xf]
  %v86 = vld [vmem:[%s1 + $0x11c] sm:$0xf]
  %v87 = vld [vmem:[%s1 + $0x120] sm:$0xf]
  %v88 = vld [vmem:[%s1 + $0x124] sm:$0xf]
  %v89 = vld [vmem:[%s1 + $0x128] sm:$0xf]
  %v90 = vld [vmem:[%s1 + $0x12c] sm:$0xf]
  %v91 = vld [vmem:[%s1 + $0x130] sm:$0xf]
  %v92 = vld [vmem:[%s1 + $0x134] sm:$0xf]
  %v93 = vld [vmem:[%s1 + $0x138] sm:$0xf]
  %v94 = vld [vmem:[%s1 + $0x13c] sm:$0xf]
  %v95 = vld [vmem:[%s1 + $0x140] sm:$0xf]
  %v96 = vld [vmem:[%s1 + $0x144] sm:$0xf]
  %v97 = vld [vmem:[%s1 + $0x148] sm:$0xf]
  %v98 = vld [vmem:[%s1 + $0x14c] sm:$0xf]
  %v99 = vld [vmem:[%s1 + $0x150] sm:$0xf]
  %v100 = vld [vmem:[%s1 + $0x154] sm:$0xf]
  %v101 = vld [vmem:[%s1 + $0x158] sm:$0xf]
  %v102 = vld [vmem:[%s1 + $0x15c] sm:$0xf]
  %v103 = vld [vmem:[%s1 + $0x160] sm:$0xf]
  %v104 = vld [vmem:[%s1 + $0x164] sm:$0xf]
  %v105 = vld [vmem:[%s1 + $0x168] sm:$0xf]
  %v106 = vld [vmem:[%s1 + $0x16c] sm:$0xf]
  %v107 = vld [vmem:[%s1 + $0x170] sm:$0xf]
  %v108 = vld [vmem:[%s1 + $0x174] sm:$0xf]
  %v109 = vld [vmem:[%s1 + $0x178] sm:$0xf]
  %v110 = vld [vmem:[%s1 + $0x17c] sm:$0xf]
  %v111 = vld [vmem:[%s1 + $0x180] sm:$0xf]
  %v112 = vld [vmem:[%s1 + $0x184] sm:$0xf]
  %v113 = vld [vmem:[%s1 + $0x188] sm:$0xf]
  %v114 = vld [vmem:[%s1 + $0x18c] sm:$0xf]
  %v115 = vld [vmem:[%s0] sm:$0xff]
  %v116 = vld [vmem:[%s0 + $0x8] sm:$0xff]
  %v117 = vld [vmem:[%s0 + $0x10] sm:$0xff]
  %v118 = vld [vmem:[%s0 + $0x18] sm:$0xf]
  %v123 = vunpack.c.l.b16 %v115
  %v124 = vunpack.c.h.b16 %v115
  %v125 = vunpack.c.l.b16 %v116
  %v126 = vunpack.c.h.b16 %v116
  %v127 = vunpack.c.l.b16 %v117
  %v128 = vunpack.c.h.b16 %v117
  %v129 = vunpack.c.l.b16 %v118
  %v130 = vpack.c.b16 %v123, %v123
  %v131 = vpack.c.b16 %v124, %v124
  %v132 = vpack.c.b16 %v125, %v125
  %v133 = vpack.c.b16 %v126, %v126
  %v134 = vpack.c.b16 %v127, %v127
  %v135 = vpack.c.b16 %v128, %v128
  %v136 = vpack.c.b16 %v129, %v129
  %v243 = vunpack.c.l.b16 %v15
  %v244 = vunpack.c.l.b16 %v16
  %v245 = vunpack.c.l.b16 %v17
  %v246 = vunpack.c.l.b16 %v18
  %v247 = vunpack.c.l.b16 %v19
  %v248 = vunpack.c.l.b16 %v20
  %v249 = vunpack.c.l.b16 %v21
  %v250 = vunpack.c.l.b16 %v22
  %v251 = vunpack.c.l.b16 %v23
  %v252 = vunpack.c.l.b16 %v24
  %v253 = vunpack.c.l.b16 %v25
  %v254 = vunpack.c.l.b16 %v26
  %v255 = vunpack.c.l.b16 %v27
  %v256 = vunpack.c.l.b16 %v28
  %v257 = vunpack.c.l.b16 %v29
  %v258 = vunpack.c.l.b16 %v30
  %v259 = vunpack.c.l.b16 %v31
  %v260 = vunpack.c.l.b16 %v32
  %v261 = vunpack.c.l.b16 %v33
  %v262 = vunpack.c.l.b16 %v34
  %v263 = vunpack.c.l.b16 %v35
  %v264 = vunpack.c.l.b16 %v36
  %v265 = vunpack.c.l.b16 %v37
  %v266 = vunpack.c.l.b16 %v38
  %v267 = vunpack.c.l.b16 %v39
  %v268 = vunpack.c.l.b16 %v40
  %v269 = vunpack.c.l.b16 %v41
  %v270 = vunpack.c.l.b16 %v42
  %v271 = vunpack.c.l.b16 %v43
  %v272 = vunpack.c.l.b16 %v44
  %v273 = vunpack.c.l.b16 %v45
  %v274 = vunpack.c.l.b16 %v46
  %v275 = vunpack.c.l.b16 %v47
  %v276 = vunpack.c.l.b16 %v48
  %v277 = vunpack.c.l.b16 %v49
  %v278 = vunpack.c.l.b16 %v50
  %v279 = vunpack.c.l.b16 %v51
  %v280 = vunpack.c.l.b16 %v52
  %v281 = vunpack.c.l.b16 %v53
  %v282 = vunpack.c.l.b16 %v54
  %v283 = vunpack.c.l.b16 %v55
  %v284 = vunpack.c.l.b16 %v56
  %v285 = vunpack.c.l.b16 %v57
  %v286 = vunpack.c.l.b16 %v58
  %v287 = vunpack.c.l.b16 %v59
  %v288 = vunpack.c.l.b16 %v60
  %v289 = vunpack.c.l.b16 %v61
  %v290 = vunpack.c.l.b16 %v62
  %v291 = vunpack.c.l.b16 %v63
  %v292 = vunpack.c.l.b16 %v64
  %v293 = vunpack.c.l.b16 %v65
  %v294 = vunpack.c.l.b16 %v66
  %v295 = vunpack.c.l.b16 %v67
  %v296 = vunpack.c.l.b16 %v68
  %v297 = vunpack.c.l.b16 %v69
  %v298 = vunpack.c.l.b16 %v70
  %v299 = vunpack.c.l.b16 %v71
  %v300 = vunpack.c.l.b16 %v72
  %v301 = vunpack.c.l.b16 %v73
  %v302 = vunpack.c.l.b16 %v74
  %v303 = vunpack.c.l.b16 %v75
  %v304 = vunpack.c.l.b16 %v76
  %v305 = vunpack.c.l.b16 %v77
  %v306 = vunpack.c.l.b16 %v78
  %v307 = vunpack.c.l.b16 %v79
  %v308 = vunpack.c.l.b16 %v80
  %v309 = vunpack.c.l.b16 %v81
  %v310 = vunpack.c.l.b16 %v82
  %v311 = vunpack.c.l.b16 %v83
  %v312 = vunpack.c.l.b16 %v84
  %v313 = vunpack.c.l.b16 %v85
  %v314 = vunpack.c.l.b16 %v86
  %v315 = vunpack.c.l.b16 %v87
  %v316 = vunpack.c.l.b16 %v88
  %v317 = vunpack.c.l.b16 %v89
  %v318 = vunpack.c.l.b16 %v90
  %v319 = vunpack.c.l.b16 %v91
  %v320 = vunpack.c.l.b16 %v92
  %v321 = vunpack.c.l.b16 %v93
  %v322 = vunpack.c.l.b16 %v94
  %v323 = vunpack.c.l.b16 %v95
  %v324 = vunpack.c.l.b16 %v96
  %v325 = vunpack.c.l.b16 %v97
  %v326 = vunpack.c.l.b16 %v98
  %v327 = vunpack.c.l.b16 %v99
  %v328 = vunpack.c.l.b16 %v100
  %v329 = vunpack.c.l.b16 %v101
  %v330 = vunpack.c.l.b16 %v102
  %v331 = vunpack.c.l.b16 %v103
  %v332 = vunpack.c.l.b16 %v104
  %v333 = vunpack.c.l.b16 %v105
  %v334 = vunpack.c.l.b16 %v106
  %v335 = vunpack.c.l.b16 %v107
  %v336 = vunpack.c.l.b16 %v108
  %v337 = vunpack.c.l.b16 %v109
  %v338 = vunpack.c.l.b16 %v110
  %v339 = vunpack.c.l.b16 %v111
  %v340 = vunpack.c.l.b16 %v112
  %v341 = vunpack.c.l.b16 %v113
  %v342 = vunpack.c.l.b16 %v114
  %v343 = vpack.c.b16 %v244, %v243
  %v344 = vpack.c.b16 %v246, %v245
  %v345 = vpack.c.b16 %v248, %v247
  %v346 = vpack.c.b16 %v250, %v249
  %v347 = vpack.c.b16 %v252, %v251
  %v348 = vpack.c.b16 %v254, %v253
  %v349 = vpack.c.b16 %v256, %v255
  %v350 = vpack.c.b16 %v258, %v257
  %v351 = vpack.c.b16 %v260, %v259
  %v352 = vpack.c.b16 %v262, %v261
  %v353 = vpack.c.b16 %v264, %v263
  %v354 = vpack.c.b16 %v266, %v265
  %v355 = vpack.c.b16 %v268, %v267
  %v356 = vpack.c.b16 %v270, %v269
  %v357 = vpack.c.b16 %v272, %v271
  %v358 = vpack.c.b16 %v274, %v273
  %v359 = vpack.c.b16 %v276, %v275
  %v360 = vpack.c.b16 %v278, %v277
  %v361 = vpack.c.b16 %v280, %v279
  %v362 = vpack.c.b16 %v282, %v281
  %v363 = vpack.c.b16 %v284, %v283
  %v364 = vpack.c.b16 %v286, %v285
  %v365 = vpack.c.b16 %v288, %v287
  %v366 = vpack.c.b16 %v290, %v289
  %v367 = vpack.c.b16 %v292, %v291
  %v368 = vpack.c.b16 %v294, %v293
  %v369 = vpack.c.b16 %v296, %v295
  %v370 = vpack.c.b16 %v298, %v297
  %v371 = vpack.c.b16 %v300, %v299
  %v372 = vpack.c.b16 %v302, %v301
  %v373 = vpack.c.b16 %v304, %v303
  %v374 = vpack.c.b16 %v306, %v305
  %v375 = vpack.c.b16 %v308, %v307
  %v376 = vpack.c.b16 %v310, %v309
  %v377 = vpack.c.b16 %v312, %v311
  %v378 = vpack.c.b16 %v314, %v313
  %v379 = vpack.c.b16 %v316, %v315
  %v380 = vpack.c.b16 %v318, %v317
  %v381 = vpack.c.b16 %v320, %v319
  %v382 = vpack.c.b16 %v322, %v321
  %v383 = vpack.c.b16 %v324, %v323
  %v384 = vpack.c.b16 %v326, %v325
  %v385 = vpack.c.b16 %v328, %v327
  %v386 = vpack.c.b16 %v330, %v329
  %v387 = vpack.c.b16 %v332, %v331
  %v388 = vpack.c.b16 %v334, %v333
  %v389 = vpack.c.b16 %v336, %v335
  %v390 = vpack.c.b16 %v338, %v337
  %v391 = vpack.c.b16 %v340, %v339
  %v392 = vpack.c.b16 %v342, %v341
  %vm443 = vcmask 261120
  %v445 = vsel %vm443, %v136, 0
  %447 = vmatpush.bf16.msra.mxu0 %v350
  %448 = vmatpush.bf16.msra.mxu0 %v349
  %449 = vmatpush.bf16.msra.mxu0 %v348
  %450 = vmatpush.bf16.msra.mxu0 %v347
  %451 = vmatpush.bf16.msra.mxu0 %v346
  %452 = vmatpush.bf16.msra.mxu0 %v345
  %453 = vmatpush.bf16.msra.mxu0 %v344
  %454 = vmatpush.bf16.msra.mxu0 %v343
  %455 = vmatmul.bf16.gmra.mxu0 %v130
  %v456 = vpop.f32.mrf.mxu0
  %v457 = vadd.f32 0.0, %v456
  %v458 = vpop.f32.mrf.mxu0
  %459 = vdwg.mxu0
  %460 = vmatpush.bf16.msra.mxu0 %v358
  %461 = vmatpush.bf16.msra.mxu0 %v357
  %462 = vmatpush.bf16.msra.mxu0 %v356
  %463 = vmatpush.bf16.msra.mxu0 %v355
  %464 = vmatpush.bf16.msra.mxu0 %v354
  %465 = vmatpush.bf16.msra.mxu0 %v353
  %466 = vmatpush.bf16.msra.mxu0 %v352
  %467 = vmatpush.bf16.msra.mxu0 %v351
  %468 = vmatmul.bf16.gmra.mxu0 %v131
  %v469 = vpop.f32.mrf.mxu0
  %v470 = vadd.f32 %v457, %v469
  %v471 = vpop.f32.mrf.mxu0
  %472 = vdwg.mxu0
  %473 = vmatpush.bf16.msra.mxu0 %v366
  %474 = vmatpush.bf16.msra.mxu0 %v365
  %475 = vmatpush.bf16.msra.mxu0 %v364
  %476 = vmatpush.bf16.msra.mxu0 %v363
  %477 = vmatpush.bf16.msra.mxu0 %v362
  %478 = vmatpush.bf16.msra.mxu0 %v361
  %479 = vmatpush.bf16.msra.mxu0 %v360
  %480 = vmatpush.bf16.msra.mxu0 %v359
  %481 = vmatmul.bf16.gmra.mxu0 %v132
  %v482 = vpop.f32.mrf.mxu0
  %v483 = vadd.f32 %v470, %v482
  %v484 = vpop.f32.mrf.mxu0
  %485 = vdwg.mxu0
  %486 = vmatpush.bf16.msra.mxu0 %v374
  %487 = vmatpush.bf16.msra.mxu0 %v373
  %488 = vmatpush.bf16.msra.mxu0 %v372
  %489 = vmatpush.bf16.msra.mxu0 %v371
  %490 = vmatpush.bf16.msra.mxu0 %v370
  %491 = vmatpush.bf16.msra.mxu0 %v369
  %492 = vmatpush.bf16.msra.mxu0 %v368
  %493 = vmatpush.bf16.msra.mxu0 %v367
  %494 = vmatmul.bf16.gmra.mxu0 %v133
  %v495 = vpop.f32.mrf.mxu0
  %v496 = vadd.f32 %v483, %v495
  %v497 = vpop.f32.mrf.mxu0
  %498 = vdwg.mxu0
  %499 = vmatpush.bf16.msra.mxu0 %v382
  %500 = vmatpush.bf16.msra.mxu0 %v381
  %501 = vmatpush.bf16.msra.mxu0 %v380
  %502 = vmatpush.bf16.msra.mxu0 %v379
  %503 = vmatpush.bf16.msra.mxu0 %v378
  %504 = vmatpush.bf16.msra.mxu0 %v377
  %505 = vmatpush.bf16.msra.mxu0 %v376
  %506 = vmatpush.bf16.msra.mxu0 %v375
  %507 = vmatmul.bf16.gmra.mxu0 %v134
  %v508 = vpop.f32.mrf.mxu0
  %v509 = vadd.f32 %v496, %v508
  %v510 = vpop.f32.mrf.mxu0
  %511 = vdwg.mxu0
  %512 = vmatpush.bf16.msra.mxu0 %v390
  %513 = vmatpush.bf16.msra.mxu0 %v389
  %514 = vmatpush.bf16.msra.mxu0 %v388
  %515 = vmatpush.bf16.msra.mxu0 %v387
  %516 = vmatpush.bf16.msra.mxu0 %v386
  %517 = vmatpush.bf16.msra.mxu0 %v385
  %518 = vmatpush.bf16.msra.mxu0 %v384
  %519 = vmatpush.bf16.msra.mxu0 %v383
  %520 = vmatmul.bf16.gmra.mxu0 %v135
  %v521 = vpop.f32.mrf.mxu0
  %v522 = vadd.f32 %v509, %v521
  %v523 = vpop.f32.mrf.mxu0
  %524 = vdwg.mxu0
  %525 = vmatpush.bf16.msra.mxu0 0
  %526 = vmatpush.bf16.msra.mxu0 0
  %527 = vmatpush.bf16.msra.mxu0 0
  %528 = vmatpush.bf16.msra.mxu0 0
  %529 = vmatpush.bf16.msra.mxu0 0
  %530 = vmatpush.bf16.msra.mxu0 0
  %531 = vmatpush.bf16.msra.mxu0 %v392
  %532 = vmatpush.bf16.msra.mxu0 %v391
  %533 = vmatmul.bf16.gmra.mxu0 %v445
  %v534 = vpop.f32.mrf.mxu0
  %v535 = vadd.f32 %v522, %v534
  %v536 = vpop.f32.mrf.mxu0
  %537 = vdwg.mxu0
  %s538 = scalar_lea.vmem %s0, 28
  %v539 = vld [vmem:[%s538] sm:$0xff]
  %v540 = vld [vmem:[%s538 + $0x8] sm:$0xff]
  %v541 = vld [vmem:[%s538 + $0x10] sm:$0xff]
  %v542 = vld [vmem:[%s538 + $0x18] sm:$0xf]
  %v547 = vunpack.c.l.b16 %v539
  %v548 = vunpack.c.h.b16 %v539
  %v549 = vunpack.c.l.b16 %v540
  %v550 = vunpack.c.h.b16 %v540
  %v551 = vunpack.c.l.b16 %v541
  %v552 = vunpack.c.h.b16 %v541
  %v553 = vunpack.c.l.b16 %v542
  %v554 = vpack.c.b16 %v547, %v547
  %v555 = vpack.c.b16 %v548, %v548
  %v556 = vpack.c.b16 %v549, %v549
  %v557 = vpack.c.b16 %v550, %v550
  %v558 = vpack.c.b16 %v551, %v551
  %v559 = vpack.c.b16 %v552, %v552
  %v560 = vpack.c.b16 %v553, %v553
  %v568 = vsel %vm443, %v560, 0
  %570 = vmatpush.bf16.msra.mxu0 %v350
  %571 = vmatpush.bf16.msra.mxu0 %v349
  %572 = vmatpush.bf16.msra.mxu0 %v348
  %573 = vmatpush.bf16.msra.mxu0 %v347
  %574 = vmatpush.bf16.msra.mxu0 %v346
  %575 = vmatpush.bf16.msra.mxu0 %v345
  %576 = vmatpush.bf16.msra.mxu0 %v344
  %577 = vmatpush.bf16.msra.mxu0 %v343
  %578 = vmatmul.bf16.gmra.mxu0 %v554
  %v579 = vpop.f32.mrf.mxu0
  %v580 = vadd.f32 0.0, %v579
  %v581 = vpop.f32.mrf.mxu0
  %582 = vdwg.mxu0
  %583 = vmatpush.bf16.msra.mxu0 %v358
  %584 = vmatpush.bf16.msra.mxu0 %v357
  %585 = vmatpush.bf16.msra.mxu0 %v356
  %586 = vmatpush.bf16.msra.mxu0 %v355
  %587 = vmatpush.bf16.msra.mxu0 %v354
  %588 = vmatpush.bf16.msra.mxu0 %v353
  %589 = vmatpush.bf16.msra.mxu0 %v352
  %590 = vmatpush.bf16.msra.mxu0 %v351
  %591 = vmatmul.bf16.gmra.mxu0 %v555
  %v592 = vpop.f32.mrf.mxu0
  %v593 = vadd.f32 %v580, %v592
  %v594 = vpop.f32.mrf.mxu0
  %595 = vdwg.mxu0
  %596 = vmatpush.bf16.msra.mxu0 %v366
  %597 = vmatpush.bf16.msra.mxu0 %v365
  %598 = vmatpush.bf16.msra.mxu0 %v364
  %599 = vmatpush.bf16.msra.mxu0 %v363
  %600 = vmatpush.bf16.msra.mxu0 %v362
  %601 = vmatpush.bf16.msra.mxu0 %v361
  %602 = vmatpush.bf16.msra.mxu0 %v360
  %603 = vmatpush.bf16.msra.mxu0 %v359
  %604 = vmatmul.bf16.gmra.mxu0 %v556
  %v605 = vpop.f32.mrf.mxu0
  %v606 = vadd.f32 %v593, %v605
  %v607 = vpop.f32.mrf.mxu0
  %608 = vdwg.mxu0
  %609 = vmatpush.bf16.msra.mxu0 %v374
  %610 = vmatpush.bf16.msra.mxu0 %v373
  %611 = vmatpush.bf16.msra.mxu0 %v372
  %612 = vmatpush.bf16.msra.mxu0 %v371
  %613 = vmatpush.bf16.msra.mxu0 %v370
  %614 = vmatpush.bf16.msra.mxu0 %v369
  %615 = vmatpush.bf16.msra.mxu0 %v368
  %616 = vmatpush.bf16.msra.mxu0 %v367
  %617 = vmatmul.bf16.gmra.mxu0 %v557
  %v618 = vpop.f32.mrf.mxu0
  %v619 = vadd.f32 %v606, %v618
  %v620 = vpop.f32.mrf.mxu0
  %621 = vdwg.mxu0
  %622 = vmatpush.bf16.msra.mxu0 %v382
  %623 = vmatpush.bf16.msra.mxu0 %v381
  %624 = vmatpush.bf16.msra.mxu0 %v380
  %625 = vmatpush.bf16.msra.mxu0 %v379
  %626 = vmatpush.bf16.msra.mxu0 %v378
  %627 = vmatpush.bf16.msra.mxu0 %v377
  %628 = vmatpush.bf16.msra.mxu0 %v376
  %629 = vmatpush.bf16.msra.mxu0 %v375
  %630 = vmatmul.bf16.gmra.mxu0 %v558
  %v631 = vpop.f32.mrf.mxu0
  %v632 = vadd.f32 %v619, %v631
  %v633 = vpop.f32.mrf.mxu0
  %634 = vdwg.mxu0
  %635 = vmatpush.bf16.msra.mxu0 %v390
  %636 = vmatpush.bf16.msra.mxu0 %v389
  %637 = vmatpush.bf16.msra.mxu0 %v388
  %638 = vmatpush.bf16.msra.mxu0 %v387
  %639 = vmatpush.bf16.msra.mxu0 %v386
  %640 = vmatpush.bf16.msra.mxu0 %v385
  %641 = vmatpush.bf16.msra.mxu0 %v384
  %642 = vmatpush.bf16.msra.mxu0 %v383
  %643 = vmatmul.bf16.gmra.mxu0 %v559
  %v644 = vpop.f32.mrf.mxu0
  %v645 = vadd.f32 %v632, %v644
  %v646 = vpop.f32.mrf.mxu0
  %647 = vdwg.mxu0
  %648 = vmatpush.bf16.msra.mxu0 0
  %649 = vmatpush.bf16.msra.mxu0 0
  %650 = vmatpush.bf16.msra.mxu0 0
  %651 = vmatpush.bf16.msra.mxu0 0
  %652 = vmatpush.bf16.msra.mxu0 0
  %653 = vmatpush.bf16.msra.mxu0 0
  %654 = vmatpush.bf16.msra.mxu0 %v392
  %655 = vmatpush.bf16.msra.mxu0 %v391
  %656 = vmatmul.bf16.gmra.mxu0 %v568
  %v657 = vpop.f32.mrf.mxu0
  %v658 = vadd.f32 %v645, %v657
  %v659 = vpop.f32.mrf.mxu0
  %660 = vdwg.mxu0
  %v661 = vmax.f32 %v535, %v658
  %s662 = scalar_lea.vmem %s0, 56
  %v663 = vld [vmem:[%s662] sm:$0xff]
  %v664 = vld [vmem:[%s662 + $0x8] sm:$0xff]
  %v665 = vld [vmem:[%s662 + $0x10] sm:$0xff]
  %v666 = vld [vmem:[%s662 + $0x18] sm:$0xf]
  %v671 = vunpack.c.l.b16 %v663
  %v672 = vunpack.c.h.b16 %v663
  %v673 = vunpack.c.l.b16 %v664
  %v674 = vunpack.c.h.b16 %v664
  %v675 = vunpack.c.l.b16 %v665
  %v676 = vunpack.c.h.b16 %v665
  %v677 = vunpack.c.l.b16 %v666
  %v678 = vpack.c.b16 %v671, %v671
  %v679 = vpack.c.b16 %v672, %v672
  %v680 = vpack.c.b16 %v673, %v673
  %v681 = vpack.c.b16 %v674, %v674
  %v682 = vpack.c.b16 %v675, %v675
  %v683 = vpack.c.b16 %v676, %v676
  %v684 = vpack.c.b16 %v677, %v677
  %v692 = vsel %vm443, %v684, 0
  %694 = vmatpush.bf16.msra.mxu0 %v350
  %695 = vmatpush.bf16.msra.mxu0 %v349
  %696 = vmatpush.bf16.msra.mxu0 %v348
  %697 = vmatpush.bf16.msra.mxu0 %v347
  %698 = vmatpush.bf16.msra.mxu0 %v346
  %699 = vmatpush.bf16.msra.mxu0 %v345
  %700 = vmatpush.bf16.msra.mxu0 %v344
  %701 = vmatpush.bf16.msra.mxu0 %v343
  %702 = vmatmul.bf16.gmra.mxu0 %v678
  %v703 = vpop.f32.mrf.mxu0
  %v704 = vadd.f32 0.0, %v703
  %v705 = vpop.f32.mrf.mxu0
  %706 = vdwg.mxu0
  %707 = vmatpush.bf16.msra.mxu0 %v358
  %708 = vmatpush.bf16.msra.mxu0 %v357
  %709 = vmatpush.bf16.msra.mxu0 %v356
  %710 = vmatpush.bf16.msra.mxu0 %v355
  %711 = vmatpush.bf16.msra.mxu0 %v354
  %712 = vmatpush.bf16.msra.mxu0 %v353
  %713 = vmatpush.bf16.msra.mxu0 %v352
  %714 = vmatpush.bf16.msra.mxu0 %v351
  %715 = vmatmul.bf16.gmra.mxu0 %v679
  %v716 = vpop.f32.mrf.mxu0
  %v717 = vadd.f32 %v704, %v716
  %v718 = vpop.f32.mrf.mxu0
  %719 = vdwg.mxu0
  %720 = vmatpush.bf16.msra.mxu0 %v366
  %721 = vmatpush.bf16.msra.mxu0 %v365
  %722 = vmatpush.bf16.msra.mxu0 %v364
  %723 = vmatpush.bf16.msra.mxu0 %v363
  %724 = vmatpush.bf16.msra.mxu0 %v362
  %725 = vmatpush.bf16.msra.mxu0 %v361
  %726 = vmatpush.bf16.msra.mxu0 %v360
  %727 = vmatpush.bf16.msra.mxu0 %v359
  %728 = vmatmul.bf16.gmra.mxu0 %v680
  %v729 = vpop.f32.mrf.mxu0
  %v730 = vadd.f32 %v717, %v729
  %v731 = vpop.f32.mrf.mxu0
  %732 = vdwg.mxu0
  %733 = vmatpush.bf16.msra.mxu0 %v374
  %734 = vmatpush.bf16.msra.mxu0 %v373
  %735 = vmatpush.bf16.msra.mxu0 %v372
  %736 = vmatpush.bf16.msra.mxu0 %v371
  %737 = vmatpush.bf16.msra.mxu0 %v370
  %738 = vmatpush.bf16.msra.mxu0 %v369
  %739 = vmatpush.bf16.msra.mxu0 %v368
  %740 = vmatpush.bf16.msra.mxu0 %v367
  %741 = vmatmul.bf16.gmra.mxu0 %v681
  %v742 = vpop.f32.mrf.mxu0
  %v743 = vadd.f32 %v730, %v742
  %v744 = vpop.f32.mrf.mxu0
  %745 = vdwg.mxu0
  %746 = vmatpush.bf16.msra.mxu0 %v382
  %747 = vmatpush.bf16.msra.mxu0 %v381
  %748 = vmatpush.bf16.msra.mxu0 %v380
  %749 = vmatpush.bf16.msra.mxu0 %v379
  %750 = vmatpush.bf16.msra.mxu0 %v378
  %751 = vmatpush.bf16.msra.mxu0 %v377
  %752 = vmatpush.bf16.msra.mxu0 %v376
  %753 = vmatpush.bf16.msra.mxu0 %v375
  %754 = vmatmul.bf16.gmra.mxu0 %v682
  %v755 = vpop.f32.mrf.mxu0
  %v756 = vadd.f32 %v743, %v755
  %v757 = vpop.f32.mrf.mxu0
  %758 = vdwg.mxu0
  %759 = vmatpush.bf16.msra.mxu0 %v390
  %760 = vmatpush.bf16.msra.mxu0 %v389
  %761 = vmatpush.bf16.msra.mxu0 %v388
  %762 = vmatpush.bf16.msra.mxu0 %v387
  %763 = vmatpush.bf16.msra.mxu0 %v386
  %764 = vmatpush.bf16.msra.mxu0 %v385
  %765 = vmatpush.bf16.msra.mxu0 %v384
  %766 = vmatpush.bf16.msra.mxu0 %v383
  %767 = vmatmul.bf16.gmra.mxu0 %v683
  %v768 = vpop.f32.mrf.mxu0
  %v769 = vadd.f32 %v756, %v768
  %v770 = vpop.f32.mrf.mxu0
  %771 = vdwg.mxu0
  %772 = vmatpush.bf16.msra.mxu0 0
  %773 = vmatpush.bf16.msra.mxu0 0
  %774 = vmatpush.bf16.msra.mxu0 0
  %775 = vmatpush.bf16.msra.mxu0 0
  %776 = vmatpush.bf16.msra.mxu0 0
  %777 = vmatpush.bf16.msra.mxu0 0
  %778 = vmatpush.bf16.msra.mxu0 %v392
  %779 = vmatpush.bf16.msra.mxu0 %v391
  %780 = vmatmul.bf16.gmra.mxu0 %v692
  %v781 = vpop.f32.mrf.mxu0
  %v782 = vadd.f32 %v769, %v781
  %v783 = vpop.f32.mrf.mxu0
  %784 = vdwg.mxu0
  %s785 = scalar_lea.vmem %s0, 84
  %v786 = vld [vmem:[%s785] sm:$0xff]
  %v787 = vld [vmem:[%s785 + $0x8] sm:$0xff]
  %v788 = vld [vmem:[%s785 + $0x10] sm:$0xff]
  %v789 = vld [vmem:[%s785 + $0x18] sm:$0xf]
  %v794 = vunpack.c.l.b16 %v786
  %v795 = vunpack.c.h.b16 %v786
  %v796 = vunpack.c.l.b16 %v787
  %v797 = vunpack.c.h.b16 %v787
  %v798 = vunpack.c.l.b16 %v788
  %v799 = vunpack.c.h.b16 %v788
  %v800 = vunpack.c.l.b16 %v789
  %v801 = vpack.c.b16 %v794, %v794
  %v802 = vpack.c.b16 %v795, %v795
  %v803 = vpack.c.b16 %v796, %v796
  %v804 = vpack.c.b16 %v797, %v797
  %v805 = vpack.c.b16 %v798, %v798
  %v806 = vpack.c.b16 %v799, %v799
  %v807 = vpack.c.b16 %v800, %v800
  %v815 = vsel %vm443, %v807, 0
  %817 = vmatpush.bf16.msra.mxu0 %v350
  %818 = vmatpush.bf16.msra.mxu0 %v349
  %819 = vmatpush.bf16.msra.mxu0 %v348
  %820 = vmatpush.bf16.msra.mxu0 %v347
  %821 = vmatpush.bf16.msra.mxu0 %v346
  %822 = vmatpush.bf16.msra.mxu0 %v345
  %823 = vmatpush.bf16.msra.mxu0 %v344
  %824 = vmatpush.bf16.msra.mxu0 %v343
  %825 = vmatmul.bf16.gmra.mxu0 %v801
  %v826 = vpop.f32.mrf.mxu0
  %v827 = vadd.f32 0.0, %v826
  %v828 = vpop.f32.mrf.mxu0
  %829 = vdwg.mxu0
  %830 = vmatpush.bf16.msra.mxu0 %v358
  %831 = vmatpush.bf16.msra.mxu0 %v357
  %832 = vmatpush.bf16.msra.mxu0 %v356
  %833 = vmatpush.bf16.msra.mxu0 %v355
  %834 = vmatpush.bf16.msra.mxu0 %v354
  %835 = vmatpush.bf16.msra.mxu0 %v353
  %836 = vmatpush.bf16.msra.mxu0 %v352
  %837 = vmatpush.bf16.msra.mxu0 %v351
  %838 = vmatmul.bf16.gmra.mxu0 %v802
  %v839 = vpop.f32.mrf.mxu0
  %v840 = vadd.f32 %v827, %v839
  %v841 = vpop.f32.mrf.mxu0
  %842 = vdwg.mxu0
  %843 = vmatpush.bf16.msra.mxu0 %v366
  %844 = vmatpush.bf16.msra.mxu0 %v365
  %845 = vmatpush.bf16.msra.mxu0 %v364
  %846 = vmatpush.bf16.msra.mxu0 %v363
  %847 = vmatpush.bf16.msra.mxu0 %v362
  %848 = vmatpush.bf16.msra.mxu0 %v361
  %849 = vmatpush.bf16.msra.mxu0 %v360
  %850 = vmatpush.bf16.msra.mxu0 %v359
  %851 = vmatmul.bf16.gmra.mxu0 %v803
  %v852 = vpop.f32.mrf.mxu0
  %v853 = vadd.f32 %v840, %v852
  %v854 = vpop.f32.mrf.mxu0
  %855 = vdwg.mxu0
  %856 = vmatpush.bf16.msra.mxu0 %v374
  %857 = vmatpush.bf16.msra.mxu0 %v373
  %858 = vmatpush.bf16.msra.mxu0 %v372
  %859 = vmatpush.bf16.msra.mxu0 %v371
  %860 = vmatpush.bf16.msra.mxu0 %v370
  %861 = vmatpush.bf16.msra.mxu0 %v369
  %862 = vmatpush.bf16.msra.mxu0 %v368
  %863 = vmatpush.bf16.msra.mxu0 %v367
  %864 = vmatmul.bf16.gmra.mxu0 %v804
  %v865 = vpop.f32.mrf.mxu0
  %v866 = vadd.f32 %v853, %v865
  %v867 = vpop.f32.mrf.mxu0
  %868 = vdwg.mxu0
  %869 = vmatpush.bf16.msra.mxu0 %v382
  %870 = vmatpush.bf16.msra.mxu0 %v381
  %871 = vmatpush.bf16.msra.mxu0 %v380
  %872 = vmatpush.bf16.msra.mxu0 %v379
  %873 = vmatpush.bf16.msra.mxu0 %v378
  %874 = vmatpush.bf16.msra.mxu0 %v377
  %875 = vmatpush.bf16.msra.mxu0 %v376
  %876 = vmatpush.bf16.msra.mxu0 %v375
  %877 = vmatmul.bf16.gmra.mxu0 %v805
  %v878 = vpop.f32.mrf.mxu0
  %v879 = vadd.f32 %v866, %v878
  %v880 = vpop.f32.mrf.mxu0
  %881 = vdwg.mxu0
  %882 = vmatpush.bf16.msra.mxu0 %v390
  %883 = vmatpush.bf16.msra.mxu0 %v389
  %884 = vmatpush.bf16.msra.mxu0 %v388
  %885 = vmatpush.bf16.msra.mxu0 %v387
  %886 = vmatpush.bf16.msra.mxu0 %v386
  %887 = vmatpush.bf16.msra.mxu0 %v385
  %888 = vmatpush.bf16.msra.mxu0 %v384
  %889 = vmatpush.bf16.msra.mxu0 %v383
  %890 = vmatmul.bf16.gmra.mxu0 %v806
  %v891 = vpop.f32.mrf.mxu0
  %v892 = vadd.f32 %v879, %v891
  %v893 = vpop.f32.mrf.mxu0
  %894 = vdwg.mxu0
  %895 = vmatpush.bf16.msra.mxu0 0
  %896 = vmatpush.bf16.msra.mxu0 0
  %897 = vmatpush.bf16.msra.mxu0 0
  %898 = vmatpush.bf16.msra.mxu0 0
  %899 = vmatpush.bf16.msra.mxu0 0
  %900 = vmatpush.bf16.msra.mxu0 0
  %901 = vmatpush.bf16.msra.mxu0 %v392
  %902 = vmatpush.bf16.msra.mxu0 %v391
  %903 = vmatmul.bf16.gmra.mxu0 %v815
  %v904 = vpop.f32.mrf.mxu0
  %v905 = vadd.f32 %v892, %v904
  %v906 = vpop.f32.mrf.mxu0
  %907 = vdwg.mxu0
  %v908 = vmax.f32 %v782, %v905
  %v909 = vmax.f32 %v661, %v908
  %v910 = vld [vmem:[%s2] sm:$0x1]
  %v912 = vperm.slane %v910, 0
  %v914 = vadd.f32 %v909, %v912
  %v915 = vmax.f32 %v914, 0.0
  %916 = vst [vmem:[%s3] sm:$0xff] %v915
  // Predicated region
  $region14: #{cnn_dilation_net_forward.4} parent=0 // pred_check
    _
  $region15: #{cnn_dilation_net_forward.4} parent=0 // pred_check_branch
    %918 = sbr.rel (0) target = $region17
  $region16: #{cnn_dilation_net_forward.4} parent=0 // pred_region
    _
  $region17: #{cnn_dilation_net_forward.4} parent=0 // pred_fallthru
    _
  // Predicated region
  $region18: #{cnn_dilation_net_forward.4} parent=0 // pred_check
    _
  $region19: #{cnn_dilation_net_forward.4} parent=0 // pred_check_branch
    %920 = sbr.rel (0) target = $region21
  $region20: #{cnn_dilation_net_forward.4} parent=0 // pred_region
    _
  $region21: #{cnn_dilation_net_forward.4} parent=0 // pred_fallthru
    _

// kernel: cnn_dilation_net_forward.5
$region0: #{cnn_dilation_net_forward.5}
  #allocation0 [shape = 'u32[]', space=smem, size = 0x4, offset = 0x4, fixed_abs, tag = 'smem constant byte address 0x4 - core index']
  #allocation1 [shape = 'u32[72,128]{1,0:T(1,128)}', space=vmem, size = 0x9000, scoped, tag = 'internal scratch']
  %s0 = inlined_call_operand.vmem [shape: f32[2,512], index: 0, kind: input, shape index: {}]
  %s1 = inlined_call_operand.vmem [shape: bf16[512,100], index: 1, kind: input, shape index: {}]
  %s2 = inlined_call_operand.vmem [shape: f32[1,100], index: 2, kind: input, shape index: {}]
  %s3 = inlined_call_operand.vmem [shape: bf16[100,10], index: 3, kind: input, shape index: {}]
  %s4 = inlined_call_operand.vmem [shape: f32[1,10], index: 4, kind: input, shape index: {}]
  %s5 = inlined_call_operand.hbm [shape: f32[2,10], index: 5, kind: output, shape index: {}]
  %s6 = sld [smem:[#allocation0]]
  $region30: #{cnn_dilation_net_forward.5} parent=0
    _
  %s8 = ssub.s32 1, %s6
  %s9 = scalar_select 0, %s8, %s6
  $region1: #{cnn_dilation_net_forward.5} parent=0
    #allocation2 [shape = 'u8[1024]{0}', space=vmem, size = 0x400, scoped, tag = 'output window, operand 0, single buffered']
    #allocation3 [shape = 's32[1]{0}', space=sflag, size = 0x4, scoped, tag = 'scoped memory for cnn_dilation_net_forward.5']
    %10 = vsyncpa [#allocation3], 0
    // Predicated region
    $region2: #{cnn_dilation_net_forward.5} parent=1 // pred_check
      _
    $region3: #{cnn_dilation_net_forward.5} parent=1 // pred_check_branch
      %12 = sbr.rel (0) target = $region5
    $region4: #{cnn_dilation_net_forward.5} parent=1 // pred_region
      _
    $region5: #{cnn_dilation_net_forward.5} parent=1 // pred_fallthru
      _
    // Predicated region
    $region6: #{cnn_dilation_net_forward.5} parent=1 // pred_check
      _
    $region7: #{cnn_dilation_net_forward.5} parent=1 // pred_check_branch
      %14 = sbr.rel (0) target = $region9
    $region8: #{cnn_dilation_net_forward.5} parent=1 // pred_region
      _
    $region9: #{cnn_dilation_net_forward.5} parent=1 // pred_fallthru
      _
    // Predicated region
    $region10: #{cnn_dilation_net_forward.5} parent=1 // pred_check
      _
    $region11: #{cnn_dilation_net_forward.5} parent=1 // pred_check_branch
      %16 = sbr.rel (0) target = $region13
    $region12: #{cnn_dilation_net_forward.5} parent=1 // pred_region
      _
    $region13: #{cnn_dilation_net_forward.5} parent=1 // pred_fallthru
      _
    // Predicated region
    $region14: #{cnn_dilation_net_forward.5} parent=1 // pred_check
      _
    $region15: #{cnn_dilation_net_forward.5} parent=1 // pred_check_branch
      %18 = sbr.rel (0) target = $region17
    $region16: #{cnn_dilation_net_forward.5} parent=1 // pred_region
      _
    $region17: #{cnn_dilation_net_forward.5} parent=1 // pred_fallthru
      _
    // Predicated region
    $region18: #{cnn_dilation_net_forward.5} parent=1 // pred_check
      _
    $region19: #{cnn_dilation_net_forward.5} parent=1 // pred_check_branch
      %20 = sbr.rel (0) target = $region21
    $region20: #{cnn_dilation_net_forward.5} parent=1 // pred_region
      _
    $region21: #{cnn_dilation_net_forward.5} parent=1 // pred_fallthru
      _
    %v22 = vld [vmem:[%s1] sm:$0xf]
    %v23 = vld [vmem:[%s1 + $0x4] sm:$0xf]
    %v24 = vld [vmem:[%s1 + $0x8] sm:$0xf]
    %v25 = vld [vmem:[%s1 + $0xc] sm:$0xf]
    %v26 = vld [vmem:[%s1 + $0x10] sm:$0xf]
    %v27 = vld [vmem:[%s1 + $0x14] sm:$0xf]
    %v28 = vld [vmem:[%s1 + $0x18] sm:$0xf]
    %v29 = vld [vmem:[%s1 + $0x1c] sm:$0xf]
    %v30 = vld [vmem:[%s1 + $0x20] sm:$0xf]
    %v31 = vld [vmem:[%s1 + $0x24] sm:$0xf]
    %v32 = vld [vmem:[%s1 + $0x28] sm:$0xf]
    %v33 = vld [vmem:[%s1 + $0x2c] sm:$0xf]
    %v34 = vld [vmem:[%s1 + $0x30] sm:$0xf]
    %v35 = vld [vmem:[%s1 + $0x34] sm:$0xf]
    %v36 = vld [vmem:[%s1 + $0x38] sm:$0xf]
    %v37 = vld [vmem:[%s1 + $0x3c] sm:$0xf]
    %v38 = vld [vmem:[%s1 + $0x40] sm:$0xf]
    %v39 = vld [vmem:[%s1 + $0x44] sm:$0xf]
    %v40 = vld [vmem:[%s1 + $0x48] sm:$0xf]
    %v41 = vld [vmem:[%s1 + $0x4c] sm:$0xf]
    %v42 = vld [vmem:[%s1 + $0x50] sm:$0xf]
    %v43 = vld [vmem:[%s1 + $0x54] sm:$0xf]
    %v44 = vld [vmem:[%s1 + $0x58] sm:$0xf]
    %v45 = vld [vmem:[%s1 + $0x5c] sm:$0xf]
    %v46 = vld [vmem:[%s1 + $0x60] sm:$0xf]
    %v47 = vld [vmem:[%s1 + $0x64] sm:$0xf]
    %v48 = vld [vmem:[%s1 + $0x68] sm:$0xf]
    %v49 = vld [vmem:[%s1 + $0x6c] sm:$0xf]
    %v50 = vld [vmem:[%s1 + $0x70] sm:$0xf]
    %v51 = vld [vmem:[%s1 + $0x74] sm:$0xf]
    %v52 = vld [vmem:[%s1 + $0x78] sm:$0xf]
    %v53 = vld [vmem:[%s1 + $0x7c] sm:$0xf]
    %v54 = vld [vmem:[%s1 + $0x80] sm:$0xf]
    %v55 = vld [vmem:[%s1 + $0x84] sm:$0xf]
    %v56 = vld [vmem:[%s1 + $0x88] sm:$0xf]
    %v57 = vld [vmem:[%s1 + $0x8c] sm:$0xf]
    %v58 = vld [vmem:[%s1 + $0x90] sm:$0xf]
    %v59 = vld [vmem:[%s1 + $0x94] sm:$0xf]
    %v60 = vld [vmem:[%s1 + $0x98] sm:$0xf]
    %v61 = vld [vmem:[%s1 + $0x9c] sm:$0xf]
    %v62 = vld [vmem:[%s1 + $0xa0] sm:$0xf]
    %v63 = vld [vmem:[%s1 + $0xa4] sm:$0xf]
    %v64 = vld [vmem:[%s1 + $0xa8] sm:$0xf]
    %v65 = vld [vmem:[%s1 + $0xac] sm:$0xf]
    %v66 = vld [vmem:[%s1 + $0xb0] sm:$0xf]
    %v67 = vld [vmem:[%s1 + $0xb4] sm:$0xf]
    %v68 = vld [vmem:[%s1 + $0xb8] sm:$0xf]
    %v69 = vld [vmem:[%s1 + $0xbc] sm:$0xf]
    %v70 = vld [vmem:[%s1 + $0xc0] sm:$0xf]
    %v71 = vld [vmem:[%s1 + $0xc4] sm:$0xf]
    %v72 = vld [vmem:[%s1 + $0xc8] sm:$0xf]
    %v73 = vld [vmem:[%s1 + $0xcc] sm:$0xf]
    %v74 = vld [vmem:[%s1 + $0xd0] sm:$0xf]
    %v75 = vld [vmem:[%s1 + $0xd4] sm:$0xf]
    %v76 = vld [vmem:[%s1 + $0xd8] sm:$0xf]
    %v77 = vld [vmem:[%s1 + $0xdc] sm:$0xf]
    %v78 = vld [vmem:[%s1 + $0xe0] sm:$0xf]
    %v79 = vld [vmem:[%s1 + $0xe4] sm:$0xf]
    %v80 = vld [vmem:[%s1 + $0xe8] sm:$0xf]
    %v81 = vld [vmem:[%s1 + $0xec] sm:$0xf]
    %v82 = vld [vmem:[%s1 + $0xf0] sm:$0xf]
    %v83 = vld [vmem:[%s1 + $0xf4] sm:$0xf]
    %v84 = vld [vmem:[%s1 + $0xf8] sm:$0xf]
    %v85 = vld [vmem:[%s1 + $0xfc] sm:$0xf]
    %v86 = vld [vmem:[%s0] sm:$0xff]
    %88 = vst [vmem:[#allocation1] ss:$4 sm:$0xff] %v86
    %v89 = vld.sshfl [vmem:[#allocation1] sm:$0xff pattern:$0x73625140]
    %v90 = vld.sshfl [vmem:[#allocation1 + $0x8] sm:$0xff pattern:$0x73625140]
    %v91 = vld.sshfl [vmem:[#allocation1 + $0x10] sm:$0xff pattern:$0x73625140]
    %v92 = vld.sshfl [vmem:[#allocation1 + $0x18] sm:$0xff pattern:$0x73625140]
    %v97 = vpack.c.bf16 %v89, %v89
    %v98 = vpack.c.bf16 %v90, %v90
    %v99 = vpack.c.bf16 %v91, %v91
    %v100 = vpack.c.bf16 %v92, %v92
    %v101 = vld [vmem:[%s2] sm:$0x1]
    %v103 = vperm.slane %v101, 0
    %v169 = vunpack.c.l.b16 %v22
    %v170 = vunpack.c.l.b16 %v23
    %v171 = vunpack.c.l.b16 %v24
    %v172 = vunpack.c.l.b16 %v25
    %v173 = vunpack.c.l.b16 %v26
    %v174 = vunpack.c.l.b16 %v27
    %v175 = vunpack.c.l.b16 %v28
    %v176 = vunpack.c.l.b16 %v29
    %v177 = vunpack.c.l.b16 %v30
    %v178 = vunpack.c.l.b16 %v31
    %v179 = vunpack.c.l.b16 %v32
    %v180 = vunpack.c.l.b16 %v33
    %v181 = vunpack.c.l.b16 %v34
    %v182 = vunpack.c.l.b16 %v35
    %v183 = vunpack.c.l.b16 %v36
    %v184 = vunpack.c.l.b16 %v37
    %v185 = vunpack.c.l.b16 %v38
    %v186 = vunpack.c.l.b16 %v39
    %v187 = vunpack.c.l.b16 %v40
    %v188 = vunpack.c.l.b16 %v41
    %v189 = vunpack.c.l.b16 %v42
    %v190 = vunpack.c.l.b16 %v43
    %v191 = vunpack.c.l.b16 %v44
    %v192 = vunpack.c.l.b16 %v45
    %v193 = vunpack.c.l.b16 %v46
    %v194 = vunpack.c.l.b16 %v47
    %v195 = vunpack.c.l.b16 %v48
    %v196 = vunpack.c.l.b16 %v49
    %v197 = vunpack.c.l.b16 %v50
    %v198 = vunpack.c.l.b16 %v51
    %v199 = vunpack.c.l.b16 %v52
    %v200 = vunpack.c.l.b16 %v53
    %v201 = vunpack.c.l.b16 %v54
    %v202 = vunpack.c.l.b16 %v55
    %v203 = vunpack.c.l.b16 %v56
    %v204 = vunpack.c.l.b16 %v57
    %v205 = vunpack.c.l.b16 %v58
    %v206 = vunpack.c.l.b16 %v59
    %v207 = vunpack.c.l.b16 %v60
    %v208 = vunpack.c.l.b16 %v61
    %v209 = vunpack.c.l.b16 %v62
    %v210 = vunpack.c.l.b16 %v63
    %v211 = vunpack.c.l.b16 %v64
    %v212 = vunpack.c.l.b16 %v65
    %v213 = vunpack.c.l.b16 %v66
    %v214 = vunpack.c.l.b16 %v67
    %v215 = vunpack.c.l.b16 %v68
    %v216 = vunpack.c.l.b16 %v69
    %v217 = vunpack.c.l.b16 %v70
    %v218 = vunpack.c.l.b16 %v71
    %v219 = vunpack.c.l.b16 %v72
    %v220 = vunpack.c.l.b16 %v73
    %v221 = vunpack.c.l.b16 %v74
    %v222 = vunpack.c.l.b16 %v75
    %v223 = vunpack.c.l.b16 %v76
    %v224 = vunpack.c.l.b16 %v77
    %v225 = vunpack.c.l.b16 %v78
    %v226 = vunpack.c.l.b16 %v79
    %v227 = vunpack.c.l.b16 %v80
    %v228 = vunpack.c.l.b16 %v81
    %v229 = vunpack.c.l.b16 %v82
    %v230 = vunpack.c.l.b16 %v83
    %v231 = vunpack.c.l.b16 %v84
    %v232 = vunpack.c.l.b16 %v85
    %v233 = vpack.c.b16 %v170, %v169
    %v234 = vpack.c.b16 %v172, %v171
    %v235 = vpack.c.b16 %v174, %v173
    %v236 = vpack.c.b16 %v176, %v175
    %v237 = vpack.c.b16 %v178, %v177
    %v238 = vpack.c.b16 %v180, %v179
    %v239 = vpack.c.b16 %v182, %v181
    %v240 = vpack.c.b16 %v184, %v183
    %v241 = vpack.c.b16 %v186, %v185
    %v242 = vpack.c.b16 %v188, %v187
    %v243 = vpack.c.b16 %v190, %v189
    %v244 = vpack.c.b16 %v192, %v191
    %v245 = vpack.c.b16 %v194, %v193
    %v246 = vpack.c.b16 %v196, %v195
    %v247 = vpack.c.b16 %v198, %v197
    %v248 = vpack.c.b16 %v200, %v199
    %v249 = vpack.c.b16 %v202, %v201
    %v250 = vpack.c.b16 %v204, %v203
    %v251 = vpack.c.b16 %v206, %v205
    %v252 = vpack.c.b16 %v208, %v207
    %v253 = vpack.c.b16 %v210, %v209
    %v254 = vpack.c.b16 %v212, %v211
    %v255 = vpack.c.b16 %v214, %v213
    %v256 = vpack.c.b16 %v216, %v215
    %v257 = vpack.c.b16 %v218, %v217
    %v258 = vpack.c.b16 %v220, %v219
    %v259 = vpack.c.b16 %v222, %v221
    %v260 = vpack.c.b16 %v224, %v223
    %v261 = vpack.c.b16 %v226, %v225
    %v262 = vpack.c.b16 %v228, %v227
    %v263 = vpack.c.b16 %v230, %v229
    %v264 = vpack.c.b16 %v232, %v231
    %297 = vmatpush.bf16.msra.mxu0 %v240
    %298 = vmatpush.bf16.msra.mxu0 %v239
    %299 = vmatpush.bf16.msra.mxu0 %v238
    %300 = vmatpush.bf16.msra.mxu0 %v237
    %301 = vmatpush.bf16.msra.mxu0 %v236
    %302 = vmatpush.bf16.msra.mxu0 %v235
    %303 = vmatpush.bf16.msra.mxu0 %v234
    %304 = vmatpush.bf16.msra.mxu0 %v233
    %305 = vmatmul.bf16.gmra.mxu0 %v97
    %v306 = vpop.f32.mrf.mxu0
    %v307 = vadd.f32 %v103, %v306
    %v308 = vpop.f32.mrf.mxu0
    %309 = vdwg.mxu0
    %310 = vmatpush.bf16.msra.mxu0 %v248
    %311 = vmatpush.bf16.msra.mxu0 %v247
    %312 = vmatpush.bf16.msra.mxu0 %v246
    %313 = vmatpush.bf16.msra.mxu0 %v245
    %314 = vmatpush.bf16.msra.mxu0 %v244
    %315 = vmatpush.bf16.msra.mxu0 %v243
    %316 = vmatpush.bf16.msra.mxu0 %v242
    %317 = vmatpush.bf16.msra.mxu0 %v241
    %318 = vmatmul.bf16.gmra.mxu0 %v98
    %v319 = vpop.f32.mrf.mxu0
    %v320 = vadd.f32 %v307, %v319
    %v321 = vpop.f32.mrf.mxu0
    %322 = vdwg.mxu0
    %323 = vmatpush.bf16.msra.mxu0 %v256
    %324 = vmatpush.bf16.msra.mxu0 %v255
    %325 = vmatpush.bf16.msra.mxu0 %v254
    %326 = vmatpush.bf16.msra.mxu0 %v253
    %327 = vmatpush.bf16.msra.mxu0 %v252
    %328 = vmatpush.bf16.msra.mxu0 %v251
    %329 = vmatpush.bf16.msra.mxu0 %v250
    %330 = vmatpush.bf16.msra.mxu0 %v249
    %331 = vmatmul.bf16.gmra.mxu0 %v99
    %v332 = vpop.f32.mrf.mxu0
    %v333 = vadd.f32 %v320, %v332
    %v334 = vpop.f32.mrf.mxu0
    %335 = vdwg.mxu0
    %336 = vmatpush.bf16.msra.mxu0 %v264
    %337 = vmatpush.bf16.msra.mxu0 %v263
    %338 = vmatpush.bf16.msra.mxu0 %v262
    %339 = vmatpush.bf16.msra.mxu0 %v261
    %340 = vmatpush.bf16.msra.mxu0 %v260
    %341 = vmatpush.bf16.msra.mxu0 %v259
    %342 = vmatpush.bf16.msra.mxu0 %v258
    %343 = vmatpush.bf16.msra.mxu0 %v257
    %344 = vmatmul.bf16.gmra.mxu0 %v100
    %v345 = vpop.f32.mrf.mxu0
    %v346 = vadd.f32 %v333, %v345
    %v347 = vpop.f32.mrf.mxu0
    %348 = vdwg.mxu0
    %v349 = vmax.f32 %v346, 0.0
    %v350 = vld [vmem:[%s3] sm:$0xf]
    %v351 = vld [vmem:[%s3 + $0x4] sm:$0xf]
    %v352 = vld [vmem:[%s3 + $0x8] sm:$0xf]
    %v353 = vld [vmem:[%s3 + $0xc] sm:$0xf]
    %v354 = vld [vmem:[%s3 + $0x10] sm:$0xf]
    %v355 = vld [vmem:[%s3 + $0x14] sm:$0xf]
    %v356 = vld [vmem:[%s3 + $0x18] sm:$0xf]
    %v357 = vld [vmem:[%s3 + $0x1c] sm:$0xf]
    %v358 = vld [vmem:[%s3 + $0x20] sm:$0xf]
    %v359 = vld [vmem:[%s3 + $0x24] sm:$0xf]
    %v360 = vld [vmem:[%s3 + $0x28] sm:$0xf]
    %v361 = vld [vmem:[%s3 + $0x2c] sm:$0xf]
    %v362 = vld [vmem:[%s3 + $0x30] sm:$0x3]
    %v363 = vpack.c.bf16 %v349, %v349
    %v364 = vld [vmem:[%s4] sm:$0x1]
    %v366 = vperm.slane %v364, 0
    %v381 = vunpack.c.l.b16 %v350
    %v382 = vunpack.c.l.b16 %v351
    %v383 = vunpack.c.l.b16 %v352
    %v384 = vunpack.c.l.b16 %v353
    %v385 = vunpack.c.l.b16 %v354
    %v386 = vunpack.c.l.b16 %v355
    %v387 = vunpack.c.l.b16 %v356
    %v388 = vunpack.c.l.b16 %v357
    %v389 = vunpack.c.l.b16 %v358
    %v390 = vunpack.c.l.b16 %v359
    %v391 = vunpack.c.l.b16 %v360
    %v392 = vunpack.c.l.b16 %v361
    %v393 = vunpack.c.l.b16 %v362
    %v394 = vpack.c.b16 %v382, %v381
    %v395 = vpack.c.b16 %v384, %v383
    %v396 = vpack.c.b16 %v386, %v385
    %v397 = vpack.c.b16 %v388, %v387
    %v398 = vpack.c.b16 %v390, %v389
    %v399 = vpack.c.b16 %v392, %v391
    %v400 = vpack.c.b16 %v393, %v393
    %vm407 = vcmask 818176
    %v409 = vsel %vm407, %v363, 0
    %vm411 = vcmask 1041408
    %v413 = vsel %vm411, %v400, 0
    %415 = vmatpush.bf16.msra.mxu0 0
    %416 = vmatpush.bf16.msra.mxu0 %v413
    %417 = vmatpush.bf16.msra.mxu0 %v399
    %418 = vmatpush.bf16.msra.mxu0 %v398
    %419 = vmatpush.bf16.msra.mxu0 %v397
    %420 = vmatpush.bf16.msra.mxu0 %v396
    %421 = vmatpush.bf16.msra.mxu0 %v395
    %422 = vmatpush.bf16.msra.mxu0 %v394
    %423 = vmatmul.bf16.gmra.mxu0 %v409
    %v424 = vpop.f32.mrf.mxu0
    %v425 = vadd.f32 %v366, %v424
    %v426 = vpop.f32.mrf.mxu0
    %427 = vdwg.mxu0
    %v428 = vmax.f32 %v425, 0.0
    %vm429 = vcmask 74752
    %v430 = vsel %vm429, %v428, -inf
    %431 = vmax.xlane.f32.xlu0 %v430
    %v432 = vpop.xlane.xlu0 %431
    %v433 = vsub.f32 %v428, %v432
    %v434 = vmul.f32 %v433, 1.442695
    %v435 = vpow.pop %v434
    %v436 = vsel %vm429, %v435, 0.0
    %437 = vadd.xlane.f32.xlu0 %v436
    %v438 = vpop.xlane.xlu0 %437
    %v439 = vlog2.pop %v438
    %v440 = vmul.f32 %v439, 0.6931472
    %v441 = vsub.f32 %v433, %v440
    %442 = vst.msk [vmem:[#allocation2] sm:$0x3] %vm429, %v441
    // Predicated region
    $region22: #{cnn_dilation_net_forward.5} parent=1 // pred_check
      _
    $region23: #{cnn_dilation_net_forward.5} parent=1 // pred_check_branch
      %444 = sbr.rel (0) target = $region25
    $region24: #{cnn_dilation_net_forward.5} parent=1 // pred_region
      %446 = vsyncadd [#allocation3], 0
      %s448 = sshll.u32 [#allocation2], 4
      %s449 = int_to_ptr.vmem [resolvable:$true] %s448
      %s450 = sshll.u32 %s5, 4
      %s451 = int_to_ptr.hbm [resolvable:$true] %s450
      %453 = dma.vmem_to_hbm [thread:$0]  %s449, 32, %s451, [#allocation3]
    $region25: #{cnn_dilation_net_forward.5} parent=1 // pred_fallthru
      _
    // Predicated region
    $region26: #{cnn_dilation_net_forward.5} parent=1 // pred_check
      _
    $region27: #{cnn_dilation_net_forward.5} parent=1 // pred_check_branch
      %455 = sbr.rel (0) target = $region29
    $region28: #{cnn_dilation_net_forward.5} parent=1 // pred_region
      %457 = dma.done [#allocation3], 32
    $region29: #{cnn_dilation_net_forward.5} parent=1 // pred_fallthru
      _
    %458 = vsyncpa [#allocation3], 1

</llo_original>
